<compile_context>
chip_gen: v6e
topology: v6e:2x2x1
jax: 0.10.0
libtpu: 0.0.40
codegen_flags: <defaults>
</compile_context>

<pallas_src>
import jax
import jax.numpy as jnp
from jax.experimental import pallas as pl
from jax.experimental.pallas import tpu as pltpu


def _round_up(n, m):
    return ((n + m - 1) // m) * m


def rnn_simple_forward(token_ids, params, *, time_block=8, batch_block=8,
                       use_bf16_matmul=True):
    """token_ids: (B, T) int32. Returns (B, output_size) float32."""
    emb = params["embedding"]            # (V, E)
    w_ih = params["w_ih"]                # (E, H)  (= torch W_ih^T)
    w_hh = params["w_hh"]                # (H, H)  (= torch W_hh^T)
    b = params["b"]                      # (1, H)  (= b_ih + b_hh)
    w_out = params["w_out"]              # (H, O)  (= torch Linear.weight^T)
    b_out = params["b_out"]              # (1, O)

    B, T = token_ids.shape
    V, E = emb.shape
    H = w_hh.shape[0]
    O = w_out.shape[1]

    Tt = min(time_block, T)              # timesteps per grid step
    Bt = min(batch_block, B)             # batch rows per grid step
    assert T % Tt == 0 and B % Bt == 0 and Bt % 8 == 0
    nC = T // Tt
    nB = B // Bt

    # Lane-dense padded sizes (128-lane vregs -> unmasked vld/vst, full MXU tiles).
    Ep = _round_up(E, 128)
    Hp = _round_up(H, 128)
    Op = _round_up(O, 128)

    compute_dtype = jnp.bfloat16 if use_bf16_matmul else jnp.float32

    # Zero-pad weights.  Padded lanes/rows contribute exactly zero everywhere.
    emb_p = jnp.pad(emb, ((0, 0), (0, Ep - E))).astype(compute_dtype)
    w_ih_p = jnp.pad(w_ih, ((0, Ep - E), (0, Hp - H))).astype(compute_dtype)
    w_hh_p = jnp.pad(w_hh, ((0, Hp - H), (0, Hp - H))).astype(compute_dtype)
    b_p = jnp.pad(b, ((0, 0), (0, Hp - H))).astype(jnp.float32)
    w_out_p = jnp.pad(w_out, ((0, Hp - H), (0, Op - O))).astype(jnp.float32)
    b_out_p = jnp.pad(b_out, ((0, 0), (0, Op - O))).astype(jnp.float32)

    # Gather embeddings directly in the blocked (nB, nC, Tt*Bt, Ep) layout the
    # kernel consumes: no post-gather transpose / extra HBM round trip of the
    # activation tensor.  Only the tiny int32 id array is reshuffled.
    ids = token_ids.reshape(nB, Bt, nC, Tt).transpose(0, 2, 3, 1)  # (nB,nC,Tt,Bt)
    x = jnp.take(emb_p, ids, axis=0)                  # (nB, nC, Tt, Bt, Ep)
    x = x.reshape(nB, nC, Tt * Bt, Ep)                # contiguous -> free

    inv_T = 1.0 / float(T)

    def kernel(x_ref, wih_ref, whh_ref, b_ref, wo_ref, bo_ref,
               out_ref, h_sc, acc_sc):
        c = pl.program_id(1)

        @pl.when(c == 0)
        def _():
            h_sc[...] = jnp.zeros_like(h_sc)
            acc_sc[...] = jnp.zeros_like(acc_sc)

        # Hoisted input projection: one MXU GEMM covers all Tt timesteps of
        # this chunk; bias folded in once (not re-broadcast every step).
        xw = (jnp.dot(x_ref[...], wih_ref[...],
                      preferred_element_type=jnp.float32)
              + b_ref[...])                           # (Tt*Bt, Hp), f32

        # Serial recurrence: only h @ W_hh remains on the critical path.
        # Static unroll (Tt small and fixed) -> full scheduler visibility;
        # the slices start at multiples of 8 sublanes -> no layout copies.
        h = h_sc[...]
        acc = acc_sc[...]
        for t in range(Tt):
            hh = jnp.dot(h.astype(whh_ref.dtype), whh_ref[...],
                         preferred_element_type=jnp.float32)
            h = jnp.tanh(xw[t * Bt:(t + 1) * Bt, :] + hh)   # tanh -> EUP
            acc = acc + h
        h_sc[...] = h
        acc_sc[...] = acc

        @pl.when(c == pl.num_programs(1) - 1)
        def _():
            mean_h = acc_sc[...] * inv_T              # mean over time
            logits = (jnp.dot(mean_h, wo_ref[...],
                              preferred_element_type=jnp.float32)
                      + bo_ref[...])
            # exp goes to the EUP; epilogue runs once per batch tile, and the
            # (Bt, Op) store is a full-lane unmasked store.
            out_ref[...] = (1.0 / (1.0 + jnp.exp(-logits))).astype(out_ref.dtype)

    grid_spec = pltpu.PrefetchScalarGridSpec(
        num_scalar_prefetch=0,
        grid=(nB, nC),                                # batch parallel, time serial (last)
        in_specs=[
            pl.BlockSpec((pl.Squeezed(), pl.Squeezed(), Tt * Bt, Ep),
                         lambda bi, c: (bi, c, 0, 0)),        # x chunk
            pl.BlockSpec((Ep, Hp), lambda bi, c: (0, 0)),     # W_ih^T (resident)
            pl.BlockSpec((Hp, Hp), lambda bi, c: (0, 0)),     # W_hh^T (resident)
            pl.BlockSpec((1, Hp), lambda bi, c: (0, 0)),      # bias
            pl.BlockSpec((Hp, Op), lambda bi, c: (0, 0)),     # W_out^T (resident)
            pl.BlockSpec((1, Op), lambda bi, c: (0, 0)),      # b_out
        ],
        out_specs=pl.BlockSpec((Bt, Op), lambda bi, c: (bi, 0)),
        scratch_shapes=[
            pltpu.VMEM((Bt, Hp), jnp.float32),   # hidden state (f32 carry)
            pltpu.VMEM((Bt, Hp), jnp.float32),   # running sum for mean-pool
        ],
    )

    out_padded = pl.pallas_call(
        kernel,
        out_shape=jax.ShapeDtypeStruct((B, Op), jnp.float32),
        grid_spec=grid_spec,
        compiler_params=pltpu.CompilerParams(
            dimension_semantics=("parallel", "arbitrary"),
            vmem_limit_bytes=32 * 1024 * 1024,
        ),
    )(x, w_ih_p, w_hh_p, b_p, w_out_p, b_out_p)

    return out_padded[:, :O]


def _reference_forward(token_ids, params):
    """Pure-JAX (f32) reference matching PyTorch RNN_Simple.forward."""
    x = jnp.take(params["embedding"], token_ids, axis=0)     # (B, T, E)

    def step(h, x_t):
        h_new = jnp.tanh(x_t @ params["w_ih"] + h @ params["w_hh"] + params["b"])
        return h_new, h_new

    B = token_ids.shape[0]
    H = params["w_hh"].shape[0]
    h0 = jnp.zeros((B, H), jnp.float32)
    _, hs = jax.lax.scan(step, h0, jnp.transpose(x, (1, 0, 2)))  # (T, B, H)
    mean_h = jnp.mean(hs, axis=0)                                 # (B, H)
    logits = mean_h @ params["w_out"] + params["b_out"]
    return 1.0 / (1.0 + jnp.exp(-logits))


def _init_params(key, vocab_size, embed_dim, hidden_size, output_size):
    ks = jax.random.split(key, 7)
    s = 1.0 / jnp.sqrt(hidden_size)
    return {
        "embedding": jax.random.normal(ks[0], (vocab_size, embed_dim), jnp.float32),
        "w_ih": jax.random.uniform(ks[1], (embed_dim, hidden_size), jnp.float32, -s, s),
        "w_hh": jax.random.uniform(ks[2], (hidden_size, hidden_size), jnp.float32, -s, s),
        "b": (jax.random.uniform(ks[3], (1, hidden_size), jnp.float32, -s, s)
              + jax.random.uniform(ks[4], (1, hidden_size), jnp.float32, -s, s)),
        "w_out": jax.random.uniform(ks[5], (hidden_size, output_size), jnp.float32, -s, s),
        "b_out": jax.random.uniform(ks[6], (1, output_size), jnp.float32, -s, s),
    }


if __name__ == "__main__":
    # Small configuration consistent with the module (hidden_size=64, binary head).
    vocab_size, embed_dim, hidden_size, output_size = 32, 128, 64, 2
    batch, seq = 8, 16

    key = jax.random.PRNGKey(0)
    k_ids, k_params = jax.random.split(key)
    params = _init_params(k_params, vocab_size, embed_dim, hidden_size, output_size)
    token_ids = jax.random.randint(k_ids, (batch, seq), 0, vocab_size, jnp.int32)

    ref = jax.block_until_ready(_reference_forward(token_ids, params))

    # f32 path: tight semantics check against the PyTorch-equivalent reference.
    out_f32 = jax.block_until_ready(
        rnn_simple_forward(token_ids, params, use_bf16_matmul=False))
    assert out_f32.shape == (batch, output_size)
    assert jnp.allclose(out_f32, ref, atol=1e-4, rtol=1e-4), (out_f32, ref)

    # bf16-operand / f32-accumulate fast path (v6e/v7x MXU): looser tolerance.
    out_bf16 = jax.block_until_ready(
        rnn_simple_forward(token_ids, params, use_bf16_matmul=True))
    assert out_bf16.shape == (batch, output_size)
    assert jnp.allclose(out_bf16, ref, atol=3e-2, rtol=3e-2), (out_bf16, ref)

    print("KERNEL_OK")
</pallas_src>

<mosaic_0001>
module attributes {stable_mosaic.version = 11 : i64} {
  func.func @kernel(%arg0: i32, %arg1: i32, %arg2: memref<1x1x64x128xf32, #tpu.memory_space<vmem>>, %arg3: memref<128x128xf32, #tpu.memory_space<vmem>>, %arg4: memref<128x128xf32, #tpu.memory_space<vmem>>, %arg5: memref<1x128xf32, #tpu.memory_space<vmem>>, %arg6: memref<128x128xf32, #tpu.memory_space<vmem>>, %arg7: memref<1x128xf32, #tpu.memory_space<vmem>>, %arg8: memref<8x128xf32, #tpu.memory_space<vmem>>, %arg9: memref<8x128xf32, #tpu.memory_space<vmem>>, %arg10: memref<8x128xf32, #tpu.memory_space<vmem>>) attributes {dimension_semantics = [#tpu.dimension_semantics<parallel>, #tpu.dimension_semantics<arbitrary>], iteration_bounds = array<i64: 1, 2>, scalar_prefetch = 0 : i64, scratch_operands = 2 : i64, tpu.core_type = #tpu.core_type<tc>, window_params = [{transform_indices = @transform_0, window_bounds = array<i64: 1, 1, 64, 128>}, {pipeline_mode = #tpu.pipeline_mode<synchronous>, transform_indices = @transform_1, window_bounds = array<i64: 128, 128>}, {pipeline_mode = #tpu.pipeline_mode<synchronous>, transform_indices = @transform_2, window_bounds = array<i64: 128, 128>}, {pipeline_mode = #tpu.pipeline_mode<synchronous>, transform_indices = @transform_3, window_bounds = array<i64: 1, 128>}, {pipeline_mode = #tpu.pipeline_mode<synchronous>, transform_indices = @transform_4, window_bounds = array<i64: 128, 128>}, {pipeline_mode = #tpu.pipeline_mode<synchronous>, transform_indices = @transform_5, window_bounds = array<i64: 1, 128>}, {transform_indices = @transform_6, window_bounds = array<i64: 8, 128>}]} {
    %c0_i32 = arith.constant 0 : i32
    %0 = arith.cmpi eq, %arg1, %c0_i32 : i32
    %1 = arith.extui %0 : i1 to i32
    %c0_i32_0 = arith.constant 0 : i32
    %2 = arith.cmpi ne, %1, %c0_i32_0 : i32
    scf.if %2 {
      %cst_41 = arith.constant 0.000000e+00 : f32
      %65 = vector.broadcast %cst_41 : f32 to vector<8x128xf32>
      %c0_42 = arith.constant 0 : index
      %c0_43 = arith.constant 0 : index
      %66 = vector.load %arg9[%c0_42, %c0_43] : memref<8x128xf32, #tpu.memory_space<vmem>>, vector<8x128xf32>
      tpu.vector_store %arg9[%c0_42, %c0_43], %65 {strides = array<i32>} : memref<8x128xf32, #tpu.memory_space<vmem>>, vector<8x128xf32>,
      %cst_44 = arith.constant 0.000000e+00 : f32
      %67 = vector.broadcast %cst_44 : f32 to vector<8x128xf32>
      %c0_45 = arith.constant 0 : index
      %c0_46 = arith.constant 0 : index
      %68 = vector.load %arg10[%c0_45, %c0_46] : memref<8x128xf32, #tpu.memory_space<vmem>>, vector<8x128xf32>
      tpu.vector_store %arg10[%c0_45, %c0_46], %67 {strides = array<i32>} : memref<8x128xf32, #tpu.memory_space<vmem>>, vector<8x128xf32>,
    } else {
    }
    %c0 = arith.constant 0 : index
    %c0_1 = arith.constant 0 : index
    %c0_2 = arith.constant 0 : index
    %c0_3 = arith.constant 0 : index
    %3 = vector.load %arg2[%c0, %c0_1, %c0_2, %c0_3] : memref<1x1x64x128xf32, #tpu.memory_space<vmem>>, vector<1x1x64x128xf32>
    %4 = vector.shape_cast %3 : vector<1x1x64x128xf32> to vector<64x128xf32>
    %c0_4 = arith.constant 0 : index
    %c0_5 = arith.constant 0 : index
    %5 = vector.load %arg3[%c0_4, %c0_5] : memref<128x128xf32, #tpu.memory_space<vmem>>, vector<128x128xf32>
    %cst = arith.constant dense<0.000000e+00> : vector<64x128xf32>
    %6 = tpu.matmul %4, %5, %cst {dimension_numbers = #tpu.dot_dimension_numbers<[1], [0], [0], [1], [0, 0, 1, 1], [], []>} : vector<64x128xf32>, vector<128x128xf32>, vector<64x128xf32> -> vector<64x128xf32>
    %c0_6 = arith.constant 0 : index
    %c0_7 = arith.constant 0 : index
    %7 = vector.load %arg5[%c0_6, %c0_7] : memref<1x128xf32, #tpu.memory_space<vmem>>, vector<1x128xf32>
    %8 = vector.broadcast %7 : vector<1x128xf32> to vector<64x128xf32>
    %9 = arith.addf %6, %8 : vector<64x128xf32>
    %c0_8 = arith.constant 0 : index
    %c0_9 = arith.constant 0 : index
    %10 = vector.load %arg9[%c0_8, %c0_9] : memref<8x128xf32, #tpu.memory_space<vmem>>, vector<8x128xf32>
    %c0_10 = arith.constant 0 : index
    %c0_11 = arith.constant 0 : index
    %11 = vector.load %arg10[%c0_10, %c0_11] : memref<8x128xf32, #tpu.memory_space<vmem>>, vector<8x128xf32>
    %c0_12 = arith.constant 0 : index
    %c0_13 = arith.constant 0 : index
    %12 = vector.load %arg4[%c0_12, %c0_13] : memref<128x128xf32, #tpu.memory_space<vmem>>, vector<128x128xf32>
    %cst_14 = arith.constant dense<0.000000e+00> : vector<8x128xf32>
    %13 = tpu.matmul %10, %12, %cst_14 {dimension_numbers = #tpu.dot_dimension_numbers<[1], [0], [0], [1], [0, 0, 1, 1], [], []>} : vector<8x128xf32>, vector<128x128xf32>, vector<8x128xf32> -> vector<8x128xf32>
    %14 = vector.extract_strided_slice %9 {offsets = [0, 0], sizes = [8, 128], strides = [1, 1]} : vector<64x128xf32> to vector<8x128xf32>
    %15 = arith.addf %14, %13 : vector<8x128xf32>
    %16 = math.tanh %15 : vector<8x128xf32>
    %17 = arith.addf %11, %16 : vector<8x128xf32>
    %c0_15 = arith.constant 0 : index
    %c0_16 = arith.constant 0 : index
    %18 = vector.load %arg4[%c0_15, %c0_16] : memref<128x128xf32, #tpu.memory_space<vmem>>, vector<128x128xf32>
    %cst_17 = arith.constant dense<0.000000e+00> : vector<8x128xf32>
    %19 = tpu.matmul %16, %18, %cst_17 {dimension_numbers = #tpu.dot_dimension_numbers<[1], [0], [0], [1], [0, 0, 1, 1], [], []>} : vector<8x128xf32>, vector<128x128xf32>, vector<8x128xf32> -> vector<8x128xf32>
    %20 = vector.extract_strided_slice %9 {offsets = [8, 0], sizes = [8, 128], strides = [1, 1]} : vector<64x128xf32> to vector<8x128xf32>
    %21 = arith.addf %20, %19 : vector<8x128xf32>
    %22 = math.tanh %21 : vector<8x128xf32>
    %23 = arith.addf %17, %22 : vector<8x128xf32>
    %c0_18 = arith.constant 0 : index
    %c0_19 = arith.constant 0 : index
    %24 = vector.load %arg4[%c0_18, %c0_19] : memref<128x128xf32, #tpu.memory_space<vmem>>, vector<128x128xf32>
    %cst_20 = arith.constant dense<0.000000e+00> : vector<8x128xf32>
    %25 = tpu.matmul %22, %24, %cst_20 {dimension_numbers = #tpu.dot_dimension_numbers<[1], [0], [0], [1], [0, 0, 1, 1], [], []>} : vector<8x128xf32>, vector<128x128xf32>, vector<8x128xf32> -> vector<8x128xf32>
    %26 = vector.extract_strided_slice %9 {offsets = [16, 0], sizes = [8, 128], strides = [1, 1]} : vector<64x128xf32> to vector<8x128xf32>
    %27 = arith.addf %26, %25 : vector<8x128xf32>
    %28 = math.tanh %27 : vector<8x128xf32>
    %29 = arith.addf %23, %28 : vector<8x128xf32>
    %c0_21 = arith.constant 0 : index
    %c0_22 = arith.constant 0 : index
    %30 = vector.load %arg4[%c0_21, %c0_22] : memref<128x128xf32, #tpu.memory_space<vmem>>, vector<128x128xf32>
    %cst_23 = arith.constant dense<0.000000e+00> : vector<8x128xf32>
    %31 = tpu.matmul %28, %30, %cst_23 {dimension_numbers = #tpu.dot_dimension_numbers<[1], [0], [0], [1], [0, 0, 1, 1], [], []>} : vector<8x128xf32>, vector<128x128xf32>, vector<8x128xf32> -> vector<8x128xf32>
    %32 = vector.extract_strided_slice %9 {offsets = [24, 0], sizes = [8, 128], strides = [1, 1]} : vector<64x128xf32> to vector<8x128xf32>
    %33 = arith.addf %32, %31 : vector<8x128xf32>
    %34 = math.tanh %33 : vector<8x128xf32>
    %35 = arith.addf %29, %34 : vector<8x128xf32>
    %c0_24 = arith.constant 0 : index
    %c0_25 = arith.constant 0 : index
    %36 = vector.load %arg4[%c0_24, %c0_25] : memref<128x128xf32, #tpu.memory_space<vmem>>, vector<128x128xf32>
    %cst_26 = arith.constant dense<0.000000e+00> : vector<8x128xf32>
    %37 = tpu.matmul %34, %36, %cst_26 {dimension_numbers = #tpu.dot_dimension_numbers<[1], [0], [0], [1], [0, 0, 1, 1], [], []>} : vector<8x128xf32>, vector<128x128xf32>, vector<8x128xf32> -> vector<8x128xf32>
    %38 = vector.extract_strided_slice %9 {offsets = [32, 0], sizes = [8, 128], strides = [1, 1]} : vector<64x128xf32> to vector<8x128xf32>
    %39 = arith.addf %38, %37 : vector<8x128xf32>
    %40 = math.tanh %39 : vector<8x128xf32>
    %41 = arith.addf %35, %40 : vector<8x128xf32>
    %c0_27 = arith.constant 0 : index
    %c0_28 = arith.constant 0 : index
    %42 = vector.load %arg4[%c0_27, %c0_28] : memref<128x128xf32, #tpu.memory_space<vmem>>, vector<128x128xf32>
    %cst_29 = arith.constant dense<0.000000e+00> : vector<8x128xf32>
    %43 = tpu.matmul %40, %42, %cst_29 {dimension_numbers = #tpu.dot_dimension_numbers<[1], [0], [0], [1], [0, 0, 1, 1], [], []>} : vector<8x128xf32>, vector<128x128xf32>, vector<8x128xf32> -> vector<8x128xf32>
    %44 = vector.extract_strided_slice %9 {offsets = [40, 0], sizes = [8, 128], strides = [1, 1]} : vector<64x128xf32> to vector<8x128xf32>
    %45 = arith.addf %44, %43 : vector<8x128xf32>
    %46 = math.tanh %45 : vector<8x128xf32>
    %47 = arith.addf %41, %46 : vector<8x128xf32>
    %c0_30 = arith.constant 0 : index
    %c0_31 = arith.constant 0 : index
    %48 = vector.load %arg4[%c0_30, %c0_31] : memref<128x128xf32, #tpu.memory_space<vmem>>, vector<128x128xf32>
    %cst_32 = arith.constant dense<0.000000e+00> : vector<8x128xf32>
    %49 = tpu.matmul %46, %48, %cst_32 {dimension_numbers = #tpu.dot_dimension_numbers<[1], [0], [0], [1], [0, 0, 1, 1], [], []>} : vector<8x128xf32>, vector<128x128xf32>, vector<8x128xf32> -> vector<8x128xf32>
    %50 = vector.extract_strided_slice %9 {offsets = [48, 0], sizes = [8, 128], strides = [1, 1]} : vector<64x128xf32> to vector<8x128xf32>
    %51 = arith.addf %50, %49 : vector<8x128xf32>
    %52 = math.tanh %51 : vector<8x128xf32>
    %53 = arith.addf %47, %52 : vector<8x128xf32>
    %c0_33 = arith.constant 0 : index
    %c0_34 = arith.constant 0 : index
    %54 = vector.load %arg4[%c0_33, %c0_34] : memref<128x128xf32, #tpu.memory_space<vmem>>, vector<128x128xf32>
    %cst_35 = arith.constant dense<0.000000e+00> : vector<8x128xf32>
    %55 = tpu.matmul %52, %54, %cst_35 {dimension_numbers = #tpu.dot_dimension_numbers<[1], [0], [0], [1], [0, 0, 1, 1], [], []>} : vector<8x128xf32>, vector<128x128xf32>, vector<8x128xf32> -> vector<8x128xf32>
    %56 = vector.extract_strided_slice %9 {offsets = [56, 0], sizes = [8, 128], strides = [1, 1]} : vector<64x128xf32> to vector<8x128xf32>
    %57 = arith.addf %56, %55 : vector<8x128xf32>
    %58 = math.tanh %57 : vector<8x128xf32>
    %59 = arith.addf %53, %58 : vector<8x128xf32>
    %c0_36 = arith.constant 0 : index
    %c0_37 = arith.constant 0 : index
    %60 = vector.load %arg9[%c0_36, %c0_37] : memref<8x128xf32, #tpu.memory_space<vmem>>, vector<8x128xf32>
    tpu.vector_store %arg9[%c0_36, %c0_37], %58 {strides = array<i32>} : memref<8x128xf32, #tpu.memory_space<vmem>>, vector<8x128xf32>,
    %c0_38 = arith.constant 0 : index
    %c0_39 = arith.constant 0 : index
    %61 = vector.load %arg10[%c0_38, %c0_39] : memref<8x128xf32, #tpu.memory_space<vmem>>, vector<8x128xf32>
    tpu.vector_store %arg10[%c0_38, %c0_39], %59 {strides = array<i32>} : memref<8x128xf32, #tpu.memory_space<vmem>>, vector<8x128xf32>,
    %c1_i32 = arith.constant 1 : i32
    %62 = arith.cmpi eq, %arg1, %c1_i32 : i32
    %63 = arith.extui %62 : i1 to i32
    %c0_i32_40 = arith.constant 0 : i32
    %64 = arith.cmpi ne, %63, %c0_i32_40 : i32
    scf.if %64 {
      %c0_41 = arith.constant 0 : index
      %c0_42 = arith.constant 0 : index
      %65 = vector.load %arg10[%c0_41, %c0_42] : memref<8x128xf32, #tpu.memory_space<vmem>>, vector<8x128xf32>
      %cst_43 = arith.constant 6.250000e-02 : f32
      %66 = vector.broadcast %cst_43 : f32 to vector<8x128xf32>
      %67 = arith.mulf %65, %66 : vector<8x128xf32>
      %c0_44 = arith.constant 0 : index
      %c0_45 = arith.constant 0 : index
      %68 = vector.load %arg6[%c0_44, %c0_45] : memref<128x128xf32, #tpu.memory_space<vmem>>, vector<128x128xf32>
      %cst_46 = arith.constant dense<0.000000e+00> : vector<8x128xf32>
      %69 = tpu.matmul %67, %68, %cst_46 {dimension_numbers = #tpu.dot_dimension_numbers<[1], [0], [0], [1], [0, 0, 1, 1], [], []>} : vector<8x128xf32>, vector<128x128xf32>, vector<8x128xf32> -> vector<8x128xf32>
      %c0_47 = arith.constant 0 : index
      %c0_48 = arith.constant 0 : index
      %70 = vector.load %arg7[%c0_47, %c0_48] : memref<1x128xf32, #tpu.memory_space<vmem>>, vector<1x128xf32>
      %71 = vector.broadcast %70 : vector<1x128xf32> to vector<8x128xf32>
      %72 = arith.addf %69, %71 : vector<8x128xf32>
      %cst_49 = arith.constant 0.000000e+00 : f32
      %73 = vector.broadcast %cst_49 : f32 to vector<8x128xf32>
      %74 = arith.subf %73, %72 : vector<8x128xf32>
      %75 = math.exp %74 : vector<8x128xf32>
      %cst_50 = arith.constant 1.000000e+00 : f32
      %76 = vector.broadcast %cst_50 : f32 to vector<8x128xf32>
      %77 = arith.addf %76, %75 : vector<8x128xf32>
      %cst_51 = arith.constant 1.000000e+00 : f32
      %78 = vector.broadcast %cst_51 : f32 to vector<8x128xf32>
      %79 = arith.divf %78, %77 : vector<8x128xf32>
      %c0_52 = arith.constant 0 : index
      %c0_53 = arith.constant 0 : index
      %80 = vector.load %arg8[%c0_52, %c0_53] : memref<8x128xf32, #tpu.memory_space<vmem>>, vector<8x128xf32>
      tpu.vector_store %arg8[%c0_52, %c0_53], %79 {strides = array<i32>} : memref<8x128xf32, #tpu.memory_space<vmem>>, vector<8x128xf32>,
    } else {
    }
    return
  }
  func.func @transform_0(%arg0: i32, %arg1: i32) -> (i32, i32, i32, i32) {
    %c0_i32 = arith.constant 0 : i32
    %c0_i32_0 = arith.constant 0 : i32
    %c0_i32_1 = arith.constant 0 : i32
    return %arg0, %arg1, %c0_i32, %c0_i32_0 : i32, i32, i32, i32
  }
  func.func @transform_1(%arg0: i32, %arg1: i32) -> (i32, i32) {
    %c0_i32 = arith.constant 0 : i32
    %c0_i32_0 = arith.constant 0 : i32
    %c0_i32_1 = arith.constant 0 : i32
    return %c0_i32, %c0_i32_0 : i32, i32
  }
  func.func @transform_2(%arg0: i32, %arg1: i32) -> (i32, i32) {
    %c0_i32 = arith.constant 0 : i32
    %c0_i32_0 = arith.constant 0 : i32
    %c0_i32_1 = arith.constant 0 : i32
    return %c0_i32, %c0_i32_0 : i32, i32
  }
  func.func @transform_3(%arg0: i32, %arg1: i32) -> (i32, i32) {
    %c0_i32 = arith.constant 0 : i32
    %c0_i32_0 = arith.constant 0 : i32
    %c0_i32_1 = arith.constant 0 : i32
    return %c0_i32, %c0_i32_0 : i32, i32
  }
  func.func @transform_4(%arg0: i32, %arg1: i32) -> (i32, i32) {
    %c0_i32 = arith.constant 0 : i32
    %c0_i32_0 = arith.constant 0 : i32
    %c0_i32_1 = arith.constant 0 : i32
    return %c0_i32, %c0_i32_0 : i32, i32
  }
  func.func @transform_5(%arg0: i32, %arg1: i32) -> (i32, i32) {
    %c0_i32 = arith.constant 0 : i32
    %c0_i32_0 = arith.constant 0 : i32
    %c0_i32_1 = arith.constant 0 : i32
    return %c0_i32, %c0_i32_0 : i32, i32
  }
  func.func @transform_6(%arg0: i32, %arg1: i32) -> (i32, i32) {
    %c0_i32 = arith.constant 0 : i32
    %c0_i32_0 = arith.constant 0 : i32
    return %arg0, %c0_i32 : i32, i32
  }
}

</mosaic_0001>

<llo_original>
// kernel: tpu_custom_call.1
$region0: #{tpu_custom_call.1}
  #allocation0 [shape = 'u32[]', space=smem, size = 0x4, offset = 0x4, fixed_abs, tag = 'smem constant byte address 0x4 - core index']
  #allocation1 [shape = 'u32[144,128]{1,0:T(1,128)}', space=vmem, size = 0x12000, scoped, tag = 'internal scratch']
  #allocation2 [shape = 'f32[8,128]{1,0:T(8,128)}', space=vmem, size = 0x1000, scoped, tag = 'scratch operand']
  #allocation3 [shape = 'f32[8,128]{1,0:T(8,128)}', space=vmem, size = 0x1000, scoped, tag = 'scratch operand']
  %s0 = inlined_call_operand.hbm [shape: f32[1,2,64,128], index: 0, kind: input, shape index: {}]
  %s1 = inlined_call_operand.hbm [shape: f32[128,128], index: 1, kind: input, shape index: {}]
  %s2 = inlined_call_operand.hbm [shape: f32[128,128], index: 2, kind: input, shape index: {}]
  %s3 = inlined_call_operand.vmem [shape: f32[1,128], index: 3, kind: input, shape index: {}]
  %s4 = inlined_call_operand.hbm [shape: f32[128,128], index: 4, kind: input, shape index: {}]
  %s5 = inlined_call_operand.vmem [shape: f32[1,128], index: 5, kind: input, shape index: {}]
  %s6 = inlined_call_operand.hbm [shape: f32[8,128], index: 6, kind: output, shape index: {}]
  %s7 = sld [smem:[#allocation0]]
  $region81: #{tpu_custom_call.1} parent=0
    _
  %s9 = ssub.s32 1, %s7
  %s10 = scalar_select 0, %s9, %s7
  $region1: #{tpu_custom_call.1} parent=0
    #allocation4 [shape = 'u8[65536]{0}', space=vmem, size = 0x10000, scoped, tag = 'input window, operand 0']
    #allocation5 [shape = 's32[2]{0}', space=sflag, size = 0x8, scoped, tag = 'scoped memory for tpu_custom_call.1']
    #allocation6 [shape = 's32[2]{0}', space=sflag, size = 0x8, scoped, tag = 'scoped memory for tpu_custom_call.1']
    #allocation7 [shape = 'u8[65536]{0}', space=vmem, size = 0x10000, scoped, tag = 'input window, operand 1, single buffered']
    #allocation8 [shape = 's32[1]{0}', space=sflag, size = 0x4, scoped, tag = 'scoped memory for tpu_custom_call.1']
    #allocation9 [shape = 'u8[65536]{0}', space=vmem, size = 0x10000, scoped, tag = 'input window, operand 2, single buffered']
    #allocation10 [shape = 'u8[65536]{0}', space=vmem, size = 0x10000, scoped, tag = 'input window, operand 4, single buffered']
    #allocation11 [shape = 's32[1]{0}', space=sflag, size = 0x4, scoped, tag = 'scoped memory for tpu_custom_call.1']
    #allocation12 [shape = 'u8[4096]{0}', space=vmem, size = 0x1000, scoped, tag = 'output window, operand 0, single buffered']
    %11 = vsyncpa [#allocation5], 0
    %s12 = scalar_lea.sflag [#allocation5], 1
    %13 = vsyncpa %s12, 0
    %14 = vsyncpa [#allocation8], 0
    %15 = vsyncpa [#allocation11], 0
    %16 = vsyncpa [#allocation6], 0
    loop: start=0, step=1, limit=4
    $region2: #{tpu_custom_call.1} parent=1 // loop_pre_header
      _
    $region3: #{tpu_custom_call.1} parent=1 // loop_header
      %s18 = sphi 0, %s22
      %p19 = scmp.ge.s32.totalorder %s18, 4
      %s25 = sphi 0, %s37
      %s26 = sphi 0, %s33
      %s27 = sphi 0, %s25
      %s28 = sphi 0, %s26
      %s29 = sphi 0, %s27
      %s30 = sphi 0, %s28
      %s42 = sphi 0, %s44
      %s45 = sphi 0, %s42
      %s46 = sphi 0, %s45
      %s62 = sphi 0, %s46
      %s66 = sphi 0, %s66
      %s68 = sphi 0, %s66
      %s69 = sphi 0, %s68
      %s83 = sphi 0, %s69
      %s87 = sphi 0, %s87
      %s89 = sphi 0, %s87
      %s90 = sphi 0, %s89
      %s104 = sphi 0, %s90
      %s108 = sphi 0, %s108
      %s110 = sphi 0, %s108
      %s111 = sphi 0, %s110
      %s125 = sphi 0, %s111
      %s129 = sphi 0, %s129
      %s131 = sphi 0, %s129
      %s132 = sphi 0, %s131
      %s146 = sphi 0, %s132
      %s150 = sphi 0, %s150
      %s152 = sphi 0, %s150
      %s153 = sphi 0, %s152
      %s167 = sphi 0, %s153
      %s173 = sphi 0, %s175
      %s176 = sphi 0, %s173
      %s177 = sphi 0, %s176
      %s193 = sphi 0, %s177
    $region4: #{tpu_custom_call.1} parent=1 // loop_header_branch
      %21 = sbr.rel (%p19) target = $region8
    $region5: #{tpu_custom_call.1} parent=1 // loop_body
      %s23 = ssub.s32 %s18, 1
      %s24 = ssub.s32 %s18, 2
      %s31 = sadd.s32 1, %s26
      %p32 = scmp.ge.s32.totalorder %s31, 2
      %s33 = scalar_select %p32, 0, %s31
      %s34 = sadd.s32 1, %s25
      %s35 = scalar_select %p32, %s34, %s25
      %p36 = scmp.ge.s32.totalorder %s35, 1
      %s37 = scalar_select %p36, 0, %s35
      %s38 = ssub.s32 %s25, %s37
      %s39 = ssub.s32 %s26, %s33
      %s40 = sor.u32 %s38, %s39
      %p41 = scmp.eq.s32.totalorder %s40, 0
      %s43 = sadd.s32 %s42, 1
      %s44 = scalar_select %p41, %s42, %s43
      %p47 = pneg %p41
      %p48 = scmp.eq.s32.totalorder %s18, 1
      %p49 = por %p47, %p48
      %p50 = scmp.ne.s32.totalorder %s42, %s45
      %p51 = scmp.eq.s32.totalorder %s18, 0
      %p52 = por %p50, %p51
      %p53 = scmp.ne.s32.totalorder %s42, %s45
      %p54 = scmp.eq.s32.totalorder %s23, 1
      %p55 = por %p53, %p54
      %p56 = scmp.ne.s32.totalorder %s45, %s46
      %p57 = scmp.eq.s32.totalorder %s23, 0
      %p58 = por %p56, %p57
      %p59 = scmp.ne.s32.totalorder %s45, %s46
      %p60 = scmp.eq.s32.totalorder %s24, 1
      %p61 = por %p59, %p60
      %p63 = scmp.ne.s32.totalorder %s46, %s62
      %p64 = scmp.eq.s32.totalorder %s24, 0
      %p65 = por %p63, %p64
      %s67 = sadd.s32 %s66, 1
      %p70 = scmp.eq.s32.totalorder %s18, 1
      %p71 = scmp.ne.s32.totalorder %s66, %s68
      %p72 = scmp.eq.s32.totalorder %s18, 0
      %p73 = por %p71, %p72
      %p74 = scmp.ne.s32.totalorder %s66, %s68
      %p75 = scmp.eq.s32.totalorder %s23, 1
      %p76 = por %p74, %p75
      %p77 = scmp.ne.s32.totalorder %s68, %s69
      %p78 = scmp.eq.s32.totalorder %s23, 0
      %p79 = por %p77, %p78
      %p80 = scmp.ne.s32.totalorder %s68, %s69
      %p81 = scmp.eq.s32.totalorder %s24, 1
      %p82 = por %p80, %p81
      %p84 = scmp.ne.s32.totalorder %s69, %s83
      %p85 = scmp.eq.s32.totalorder %s24, 0
      %p86 = por %p84, %p85
      %s88 = sadd.s32 %s87, 1
      %p91 = scmp.eq.s32.totalorder %s18, 1
      %p92 = scmp.ne.s32.totalorder %s87, %s89
      %p93 = scmp.eq.s32.totalorder %s18, 0
      %p94 = por %p92, %p93
      %p95 = scmp.ne.s32.totalorder %s87, %s89
      %p96 = scmp.eq.s32.totalorder %s23, 1
      %p97 = por %p95, %p96
      %p98 = scmp.ne.s32.totalorder %s89, %s90
      %p99 = scmp.eq.s32.totalorder %s23, 0
      %p100 = por %p98, %p99
      %p101 = scmp.ne.s32.totalorder %s89, %s90
      %p102 = scmp.eq.s32.totalorder %s24, 1
      %p103 = por %p101, %p102
      %p105 = scmp.ne.s32.totalorder %s90, %s104
      %p106 = scmp.eq.s32.totalorder %s24, 0
      %p107 = por %p105, %p106
      %s109 = sadd.s32 %s108, 1
      %p112 = scmp.eq.s32.totalorder %s18, 1
      %p113 = scmp.ne.s32.totalorder %s108, %s110
      %p114 = scmp.eq.s32.totalorder %s18, 0
      %p115 = por %p113, %p114
      %p116 = scmp.ne.s32.totalorder %s108, %s110
      %p117 = scmp.eq.s32.totalorder %s23, 1
      %p118 = por %p116, %p117
      %p119 = scmp.ne.s32.totalorder %s110, %s111
      %p120 = scmp.eq.s32.totalorder %s23, 0
      %p121 = por %p119, %p120
      %p122 = scmp.ne.s32.totalorder %s110, %s111
      %p123 = scmp.eq.s32.totalorder %s24, 1
      %p124 = por %p122, %p123
      %p126 = scmp.ne.s32.totalorder %s111, %s125
      %p127 = scmp.eq.s32.totalorder %s24, 0
      %p128 = por %p126, %p127
      %s130 = sadd.s32 %s129, 1
      %p133 = scmp.eq.s32.totalorder %s18, 1
      %p134 = scmp.ne.s32.totalorder %s129, %s131
      %p135 = scmp.eq.s32.totalorder %s18, 0
      %p136 = por %p134, %p135
      %p137 = scmp.ne.s32.totalorder %s129, %s131
      %p138 = scmp.eq.s32.totalorder %s23, 1
      %p139 = por %p137, %p138
      %p140 = scmp.ne.s32.totalorder %s131, %s132
      %p141 = scmp.eq.s32.totalorder %s23, 0
      %p142 = por %p140, %p141
      %p143 = scmp.ne.s32.totalorder %s131, %s132
      %p144 = scmp.eq.s32.totalorder %s24, 1
      %p145 = por %p143, %p144
      %p147 = scmp.ne.s32.totalorder %s132, %s146
      %p148 = scmp.eq.s32.totalorder %s24, 0
      %p149 = por %p147, %p148
      %s151 = sadd.s32 %s150, 1
      %p154 = scmp.eq.s32.totalorder %s18, 1
      %p155 = scmp.ne.s32.totalorder %s150, %s152
      %p156 = scmp.eq.s32.totalorder %s18, 0
      %p157 = por %p155, %p156
      %p158 = scmp.ne.s32.totalorder %s150, %s152
      %p159 = scmp.eq.s32.totalorder %s23, 1
      %p160 = por %p158, %p159
      %p161 = scmp.ne.s32.totalorder %s152, %s153
      %p162 = scmp.eq.s32.totalorder %s23, 0
      %p163 = por %p161, %p162
      %p164 = scmp.ne.s32.totalorder %s152, %s153
      %p165 = scmp.eq.s32.totalorder %s24, 1
      %p166 = por %p164, %p165
      %p168 = scmp.ne.s32.totalorder %s153, %s167
      %p169 = scmp.eq.s32.totalorder %s24, 0
      %p170 = por %p168, %p169
      %s171 = ssub.s32 %s25, %s37
      %p172 = scmp.eq.s32.totalorder %s171, 0
      %s174 = sadd.s32 %s173, 1
      %s175 = scalar_select %p172, %s173, %s174
      %p178 = pneg %p172
      %p179 = scmp.eq.s32.totalorder %s18, 1
      %p180 = por %p178, %p179
      %p181 = scmp.ne.s32.totalorder %s173, %s176
      %p182 = scmp.eq.s32.totalorder %s18, 0
      %p183 = por %p181, %p182
      %p184 = scmp.ne.s32.totalorder %s173, %s176
      %p185 = scmp.eq.s32.totalorder %s23, 1
      %p186 = por %p184, %p185
      %p187 = scmp.ne.s32.totalorder %s176, %s177
      %p188 = scmp.eq.s32.totalorder %s23, 0
      %p189 = por %p187, %p188
      %p190 = scmp.ne.s32.totalorder %s176, %s177
      %p191 = scmp.eq.s32.totalorder %s24, 1
      %p192 = por %p190, %p191
      %p194 = scmp.ne.s32.totalorder %s177, %s193
      %p195 = scmp.eq.s32.totalorder %s24, 0
      %p196 = por %p194, %p195
      %p197 = scmp.le.s32.totalorder 1, %s18
      %p198 = scmp.lt.s32.totalorder %s18, 3
      %p199 = pnand %p197, %p198
      %p200 = pneg %p199
      // Predicated region
      $region9: #{tpu_custom_call.1} parent=5 // pred_check
        _
      $region10: #{tpu_custom_call.1} parent=5 // pred_check_branch
        %202 = sbr.rel (%p199) target = $region12
      $region11: #{tpu_custom_call.1} parent=5 // pred_region
        %s203 = ssub.s32 %s18, 1
        // Predicated region
        $region13: #{tpu_custom_call.1} parent=11 // pred_check
          %p204 = pneg %p79
        $region14: #{tpu_custom_call.1} parent=11 // pred_check_branch
          %206 = sbr.rel (%p204) target = $region16
        $region15: #{tpu_custom_call.1} parent=11 // pred_region
          %s208 = ssub.s32 2048, 2048
          %209 = vsyncadd [#allocation8], %s208
          %s210 = sshll.u32 [#allocation7], 4
          %s211 = int_to_ptr.vmem [resolvable:$true] %s210
          %216 = dma.hbm_to_vmem [thread:$0]  %s1, 2048, %s211, [#allocation8], 128, 128, 8
        $region16: #{tpu_custom_call.1} parent=11 // pred_fallthru
          _
        // Predicated region
        $region17: #{tpu_custom_call.1} parent=11 // pred_check
          %p217 = pneg %p100
        $region18: #{tpu_custom_call.1} parent=11 // pred_check_branch
          %219 = sbr.rel (%p217) target = $region20
        $region19: #{tpu_custom_call.1} parent=11 // pred_region
          %s221 = ssub.s32 2048, 2048
          %222 = vsyncadd [#allocation8], %s221
          %s223 = sshll.u32 [#allocation9], 4
          %s224 = int_to_ptr.vmem [resolvable:$true] %s223
          %229 = dma.hbm_to_vmem [thread:$0]  %s2, 2048, %s224, [#allocation8], 128, 128, 8
        $region20: #{tpu_custom_call.1} parent=11 // pred_fallthru
          _
        // Predicated region
        $region21: #{tpu_custom_call.1} parent=11 // pred_check
          %p230 = pneg %p121
        $region22: #{tpu_custom_call.1} parent=11 // pred_check_branch
          %232 = sbr.rel (%p230) target = $region24
        $region23: #{tpu_custom_call.1} parent=11 // pred_region
          _
        $region24: #{tpu_custom_call.1} parent=11 // pred_fallthru
          _
        // Predicated region
        $region25: #{tpu_custom_call.1} parent=11 // pred_check
          %p233 = pneg %p142
        $region26: #{tpu_custom_call.1} parent=11 // pred_check_branch
          %235 = sbr.rel (%p233) target = $region28
        $region27: #{tpu_custom_call.1} parent=11 // pred_region
          %s237 = ssub.s32 2048, 2048
          %238 = vsyncadd [#allocation11], %s237
          %s239 = sshll.u32 [#allocation10], 4
          %s240 = int_to_ptr.vmem [resolvable:$true] %s239
          %245 = dma.hbm_to_vmem [thread:$0]  %s4, 2048, %s240, [#allocation11], 128, 128, 8
        $region28: #{tpu_custom_call.1} parent=11 // pred_fallthru
          _
        // Predicated region
        $region29: #{tpu_custom_call.1} parent=11 // pred_check
          %p246 = pneg %p163
        $region30: #{tpu_custom_call.1} parent=11 // pred_check_branch
          %248 = sbr.rel (%p246) target = $region32
        $region31: #{tpu_custom_call.1} parent=11 // pred_region
          _
        $region32: #{tpu_custom_call.1} parent=11 // pred_fallthru
          _
      $region12: #{tpu_custom_call.1} parent=5 // pred_fallthru
        _
      %p249 = scmp.lt.s32.totalorder %s18, 2
      // Predicated region
      $region33: #{tpu_custom_call.1} parent=5 // pred_check
        %p250 = pneg %p249
      $region34: #{tpu_custom_call.1} parent=5 // pred_check_branch
        %252 = sbr.rel (%p250) target = $region36
      $region35: #{tpu_custom_call.1} parent=5 // pred_region
        // Predicated region
        $region37: #{tpu_custom_call.1} parent=35 // pred_check
          %p253 = pneg %p52
        $region38: #{tpu_custom_call.1} parent=35 // pred_check_branch
          %255 = sbr.rel (%p253) target = $region40
        $region39: #{tpu_custom_call.1} parent=35 // pred_region
          %s256 = sand.u32 %s42, 1
          %s257 = scalar_lea.sflag [#allocation5], %s256
          %s258 = sand.u32 %s42, 1
          %s259 = smul.addr %s258, 64
          %s260 = scalar_lea.vmem [#allocation4], %s259
          %s262 = ssub.s32 1024, 1024
          %263 = vsyncadd %s257, %s262
          %s264 = smul.addr %s26, 8
          %s265 = smul.addr %s25, 16
          %s266 = sadd.s32 %s264, %s265
          %s267 = smul.addr %s266, 128
          %s268 = scalar_lea.hbm %s0, %s267
          %s269 = sshll.u32 %s260, 4
          %s270 = int_to_ptr.vmem [resolvable:$true] %s269
          %275 = dma.hbm_to_vmem [thread:$0]  %s268, 1024, %s270, %s257, 128, 128, 8
        $region40: #{tpu_custom_call.1} parent=35 // pred_fallthru
          _
      $region36: #{tpu_custom_call.1} parent=5 // pred_fallthru
        _
      %p276 = scmp.le.s32.totalorder 1, %s18
      %p277 = scmp.lt.s32.totalorder %s18, 3
      %p278 = pnand %p276, %p277
      %p279 = pneg %p278
      // Predicated region
      $region41: #{tpu_custom_call.1} parent=5 // pred_check
        _
      $region42: #{tpu_custom_call.1} parent=5 // pred_check_branch
        %281 = sbr.rel (%p278) target = $region44
      $region43: #{tpu_custom_call.1} parent=5 // pred_region
        %s282 = ssub.s32 %s18, 1
        %s283 = sand.u32 %s45, 1
        %s284 = scalar_lea.sflag [#allocation5], %s283
        %s285 = sand.u32 %s45, 1
        %s286 = smul.addr %s285, 64
        %s287 = scalar_lea.vmem [#allocation4], %s286
        // Predicated region
        $region45: #{tpu_custom_call.1} parent=43 // pred_check
          %p288 = pneg %p58
        $region46: #{tpu_custom_call.1} parent=43 // pred_check_branch
          %290 = sbr.rel (%p288) target = $region48
        $region47: #{tpu_custom_call.1} parent=43 // pred_region
          %291 = dma.done %s284, 1024
        $region48: #{tpu_custom_call.1} parent=43 // pred_fallthru
          _
        // Predicated region
        $region49: #{tpu_custom_call.1} parent=43 // pred_check
          %p292 = pneg %p79
        $region50: #{tpu_custom_call.1} parent=43 // pred_check_branch
          %294 = sbr.rel (%p292) target = $region52
        $region51: #{tpu_custom_call.1} parent=43 // pred_region
          %295 = dma.done [#allocation8], 2048
        $region52: #{tpu_custom_call.1} parent=43 // pred_fallthru
          _
        // Predicated region
        $region53: #{tpu_custom_call.1} parent=43 // pred_check
          %p296 = pneg %p100
        $region54: #{tpu_custom_call.1} parent=43 // pred_check_branch
          %298 = sbr.rel (%p296) target = $region56
        $region55: #{tpu_custom_call.1} parent=43 // pred_region
          %299 = dma.done [#allocation8], 2048
        $region56: #{tpu_custom_call.1} parent=43 // pred_fallthru
          _
        // Predicated region
        $region57: #{tpu_custom_call.1} parent=43 // pred_check
          %p300 = pneg %p142
        $region58: #{tpu_custom_call.1} parent=43 // pred_check_branch
          %302 = sbr.rel (%p300) target = $region60
        $region59: #{tpu_custom_call.1} parent=43 // pred_region
          %303 = dma.done [#allocation11], 2048
        $region60: #{tpu_custom_call.1} parent=43 // pred_fallthru
          _
        %s304 = sand.u32 %s45, 1
        %s305 = scalar_lea.sflag [#allocation5], %s304
        %s306 = sand.u32 %s45, 1
        %s307 = smul.addr %s306, 64
        %s308 = scalar_lea.vmem [#allocation4], %s307
        %p309 = pneg %p58
        %p310 = pneg %p55
        %p311 = pneg %p79
        %p312 = pneg %p76
        %p313 = pneg %p100
        %p314 = pneg %p97
        %p315 = pneg %p121
        %p316 = pneg %p118
        %p317 = pneg %p142
        %p318 = pneg %p139
        %p319 = pneg %p163
        %p320 = pneg %p160
        %p321 = pneg %p189
        %p322 = pneg %p186
        %p323 = scmp.eq.s32.totalorder %s28, 0
        // Predicated region
        $region61: #{tpu_custom_call.1} parent=43 // pred_check
          %p324 = pneg %p323
        $region62: #{tpu_custom_call.1} parent=43 // pred_check_branch
          %326 = sbr.rel (%p324) target = $region64
        $region63: #{tpu_custom_call.1} parent=43 // pred_region
          %327 = vst [vmem:[#allocation2] sm:$0xff] 0.0
          %328 = vst [vmem:[#allocation3] sm:$0xff] 0.0
        $region64: #{tpu_custom_call.1} parent=43 // pred_fallthru
          _
        %v329 = vld [vmem:[%s287] sm:$0xff]
        %v330 = vld [vmem:[%s287 + $0x8] sm:$0xff]
        %v331 = vld [vmem:[%s287 + $0x10] sm:$0xff]
        %v332 = vld [vmem:[%s287 + $0x18] sm:$0xff]
        %v333 = vld [vmem:[%s287 + $0x20] sm:$0xff]
        %v334 = vld [vmem:[%s287 + $0x28] sm:$0xff]
        %v335 = vld [vmem:[%s287 + $0x30] sm:$0xff]
        %v336 = vld [vmem:[%s287 + $0x38] sm:$0xff]
        %v337 = vld [vmem:[#allocation7] sm:$0xff]
        %v338 = vld [vmem:[#allocation7 + $0x8] sm:$0xff]
        %v339 = vld [vmem:[#allocation7 + $0x10] sm:$0xff]
        %v340 = vld [vmem:[#allocation7 + $0x18] sm:$0xff]
        %v341 = vld [vmem:[#allocation7 + $0x20] sm:$0xff]
        %v342 = vld [vmem:[#allocation7 + $0x28] sm:$0xff]
        %v343 = vld [vmem:[#allocation7 + $0x30] sm:$0xff]
        %v344 = vld [vmem:[#allocation7 + $0x38] sm:$0xff]
        %v345 = vld [vmem:[#allocation7 + $0x40] sm:$0xff]
        %v346 = vld [vmem:[#allocation7 + $0x48] sm:$0xff]
        %v347 = vld [vmem:[#allocation7 + $0x50] sm:$0xff]
        %v348 = vld [vmem:[#allocation7 + $0x58] sm:$0xff]
        %v349 = vld [vmem:[#allocation7 + $0x60] sm:$0xff]
        %v350 = vld [vmem:[#allocation7 + $0x68] sm:$0xff]
        %v351 = vld [vmem:[#allocation7 + $0x70] sm:$0xff]
        %v352 = vld [vmem:[#allocation7 + $0x78] sm:$0xff]
        %v353 = vld [vmem:[%s3] sm:$0x1]
        %v355 = vlaneseq
        %v356 = vshrl.u32 %v355, 7
        %v357 = vsub.s32 0, %v356
        %v358 = vrot.slane %v353, %v357
        %360 = vmatprep.subr.mxu0 0.0
        %361 = vmatpush1.msra.mxu0 %v352
        %362 = vmatprep.subr.mxu0 0.0
        %363 = vmatpush1.msra.mxu0 %v351
        %364 = vmatprep.subr.mxu0 0.0
        %365 = vmatpush1.msra.mxu0 %v350
        %366 = vmatprep.subr.mxu0 0.0
        %367 = vmatpush1.msra.mxu0 %v349
        %368 = vmatprep.subr.mxu0 0.0
        %369 = vmatpush1.msra.mxu0 %v348
        %370 = vmatprep.subr.mxu0 0.0
        %371 = vmatpush1.msra.mxu0 %v347
        %372 = vmatprep.subr.mxu0 0.0
        %373 = vmatpush1.msra.mxu0 %v346
        %374 = vmatprep.subr.mxu0 0.0
        %375 = vmatpush1.msra.mxu0 %v345
        %376 = vmatprep.subr.mxu0 0.0
        %377 = vmatpush1.msra.mxu0 %v344
        %378 = vmatprep.subr.mxu0 0.0
        %379 = vmatpush1.msra.mxu0 %v343
        %380 = vmatprep.subr.mxu0 0.0
        %381 = vmatpush1.msra.mxu0 %v342
        %382 = vmatprep.subr.mxu0 0.0
        %383 = vmatpush1.msra.mxu0 %v341
        %384 = vmatprep.subr.mxu0 0.0
        %385 = vmatpush1.msra.mxu0 %v340
        %386 = vmatprep.subr.mxu0 0.0
        %387 = vmatpush1.msra.mxu0 %v339
        %388 = vmatprep.subr.mxu0 0.0
        %389 = vmatpush1.msra.mxu0 %v338
        %390 = vmatprep.subr.mxu0 0.0
        %391 = vmatpush1.msra.mxu0 %v337
        %392 = vmatprep.subr.mxu0 0.0
        %393 = vmatpush2.msra.mxu0 0.0
        %394 = vmatprep.subr.mxu0 0.0
        %395 = vmatpush2.msra.mxu0 0.0
        %396 = vmatprep.subr.mxu0 0.0
        %397 = vmatpush2.msra.mxu0 0.0
        %398 = vmatprep.subr.mxu0 0.0
        %399 = vmatpush2.msra.mxu0 0.0
        %400 = vmatprep.subr.mxu0 0.0
        %401 = vmatpush2.msra.mxu0 0.0
        %402 = vmatprep.subr.mxu0 0.0
        %403 = vmatpush2.msra.mxu0 0.0
        %404 = vmatprep.subr.mxu0 0.0
        %405 = vmatpush2.msra.mxu0 0.0
        %406 = vmatprep.subr.mxu0 0.0
        %407 = vmatpush2.msra.mxu0 0.0
        %408 = vmatprep.subr.mxu0 0.0
        %409 = vmatpush2.msra.mxu0 0.0
        %410 = vmatprep.subr.mxu0 0.0
        %411 = vmatpush2.msra.mxu0 0.0
        %412 = vmatprep.subr.mxu0 0.0
        %413 = vmatpush2.msra.mxu0 0.0
        %414 = vmatprep.subr.mxu0 0.0
        %415 = vmatpush2.msra.mxu0 0.0
        %416 = vmatprep.subr.mxu0 0.0
        %417 = vmatpush2.msra.mxu0 0.0
        %418 = vmatprep.subr.mxu0 0.0
        %419 = vmatpush2.msra.mxu0 0.0
        %420 = vmatprep.subr.mxu0 0.0
        %421 = vmatpush2.msra.mxu0 0.0
        %422 = vmatprep.subr.mxu0 0.0
        %423 = vmatpush2.msra.mxu0 0.0
        %424 = vmatprep.mubr.f32.mxu0 0.0
        %425 = vmatmul.mubr.f32.gmra.mxu0 %v329
        %v426 = vpop.f32.mrf.mxu0
        %v427 = vadd.f32 %v358, %v426
        %v428 = vpop.f32.mrf.mxu0
        %429 = vmatprep.mubr.f32.mxu0 0.0
        %430 = vmatmul.mubr.f32.gmra.mxu0 %v330
        %v431 = vpop.f32.mrf.mxu0
        %v432 = vadd.f32 %v358, %v431
        %v433 = vpop.f32.mrf.mxu0
        %434 = vmatprep.mubr.f32.mxu0 0.0
        %435 = vmatmul.mubr.f32.gmra.mxu0 %v331
        %v436 = vpop.f32.mrf.mxu0
        %v437 = vadd.f32 %v358, %v436
        %v438 = vpop.f32.mrf.mxu0
        %439 = vmatprep.mubr.f32.mxu0 0.0
        %440 = vmatmul.mubr.f32.gmra.mxu0 %v332
        %v441 = vpop.f32.mrf.mxu0
        %v442 = vadd.f32 %v358, %v441
        %v443 = vpop.f32.mrf.mxu0
        %444 = vmatprep.mubr.f32.mxu0 0.0
        %445 = vmatmul.mubr.f32.gmra.mxu0 %v333
        %v446 = vpop.f32.mrf.mxu0
        %v447 = vadd.f32 %v358, %v446
        %v448 = vpop.f32.mrf.mxu0
        %449 = vmatprep.mubr.f32.mxu0 0.0
        %450 = vmatmul.mubr.f32.gmra.mxu0 %v334
        %v451 = vpop.f32.mrf.mxu0
        %v452 = vadd.f32 %v358, %v451
        %v453 = vpop.f32.mrf.mxu0
        %454 = vmatprep.mubr.f32.mxu0 0.0
        %455 = vmatmul.mubr.f32.gmra.mxu0 %v335
        %v456 = vpop.f32.mrf.mxu0
        %v457 = vadd.f32 %v358, %v456
        %v458 = vpop.f32.mrf.mxu0
        %459 = vmatprep.mubr.f32.mxu0 0.0
        %460 = vmatmul.mubr.f32.gmra.mxu0 %v336
        %v461 = vpop.f32.mrf.mxu0
        %v462 = vadd.f32 %v358, %v461
        %v463 = vpop.f32.mrf.mxu0
        %464 = vdwg.mxu0
        %v465 = vld [vmem:[#allocation2] sm:$0xff]
        %v466 = vld [vmem:[#allocation3] sm:$0xff]
        %v467 = vld [vmem:[#allocation9] sm:$0xff]
        %v468 = vld [vmem:[#allocation9 + $0x8] sm:$0xff]
        %v469 = vld [vmem:[#allocation9 + $0x10] sm:$0xff]
        %v470 = vld [vmem:[#allocation9 + $0x18] sm:$0xff]
        %v471 = vld [vmem:[#allocation9 + $0x20] sm:$0xff]
        %v472 = vld [vmem:[#allocation9 + $0x28] sm:$0xff]
        %v473 = vld [vmem:[#allocation9 + $0x30] sm:$0xff]
        %v474 = vld [vmem:[#allocation9 + $0x38] sm:$0xff]
        %v475 = vld [vmem:[#allocation9 + $0x40] sm:$0xff]
        %v476 = vld [vmem:[#allocation9 + $0x48] sm:$0xff]
        %v477 = vld [vmem:[#allocation9 + $0x50] sm:$0xff]
        %v478 = vld [vmem:[#allocation9 + $0x58] sm:$0xff]
        %v479 = vld [vmem:[#allocation9 + $0x60] sm:$0xff]
        %v480 = vld [vmem:[#allocation9 + $0x68] sm:$0xff]
        %v481 = vld [vmem:[#allocation9 + $0x70] sm:$0xff]
        %v482 = vld [vmem:[#allocation9 + $0x78] sm:$0xff]
        %483 = vmatprep.subr.mxu0 0.0
        %484 = vmatpush1.msra.mxu0 %v482
        %485 = vmatprep.subr.mxu0 0.0
        %486 = vmatpush1.msra.mxu0 %v481
        %487 = vmatprep.subr.mxu0 0.0
        %488 = vmatpush1.msra.mxu0 %v480
        %489 = vmatprep.subr.mxu0 0.0
        %490 = vmatpush1.msra.mxu0 %v479
        %491 = vmatprep.subr.mxu0 0.0
        %492 = vmatpush1.msra.mxu0 %v478
        %493 = vmatprep.subr.mxu0 0.0
        %494 = vmatpush1.msra.mxu0 %v477
        %495 = vmatprep.subr.mxu0 0.0
        %496 = vmatpush1.msra.mxu0 %v476
        %497 = vmatprep.subr.mxu0 0.0
        %498 = vmatpush1.msra.mxu0 %v475
        %499 = vmatprep.subr.mxu0 0.0
        %500 = vmatpush1.msra.mxu0 %v474
        %501 = vmatprep.subr.mxu0 0.0
        %502 = vmatpush1.msra.mxu0 %v473
        %503 = vmatprep.subr.mxu0 0.0
        %504 = vmatpush1.msra.mxu0 %v472
        %505 = vmatprep.subr.mxu0 0.0
        %506 = vmatpush1.msra.mxu0 %v471
        %507 = vmatprep.subr.mxu0 0.0
        %508 = vmatpush1.msra.mxu0 %v470
        %509 = vmatprep.subr.mxu0 0.0
        %510 = vmatpush1.msra.mxu0 %v469
        %511 = vmatprep.subr.mxu0 0.0
        %512 = vmatpush1.msra.mxu0 %v468
        %513 = vmatprep.subr.mxu0 0.0
        %514 = vmatpush1.msra.mxu0 %v467
        %515 = vmatprep.subr.mxu0 0.0
        %516 = vmatpush2.msra.mxu0 0.0
        %517 = vmatprep.subr.mxu0 0.0
        %518 = vmatpush2.msra.mxu0 0.0
        %519 = vmatprep.subr.mxu0 0.0
        %520 = vmatpush2.msra.mxu0 0.0
        %521 = vmatprep.subr.mxu0 0.0
        %522 = vmatpush2.msra.mxu0 0.0
        %523 = vmatprep.subr.mxu0 0.0
        %524 = vmatpush2.msra.mxu0 0.0
        %525 = vmatprep.subr.mxu0 0.0
        %526 = vmatpush2.msra.mxu0 0.0
        %527 = vmatprep.subr.mxu0 0.0
        %528 = vmatpush2.msra.mxu0 0.0
        %529 = vmatprep.subr.mxu0 0.0
        %530 = vmatpush2.msra.mxu0 0.0
        %531 = vmatprep.subr.mxu0 0.0
        %532 = vmatpush2.msra.mxu0 0.0
        %533 = vmatprep.subr.mxu0 0.0
        %534 = vmatpush2.msra.mxu0 0.0
        %535 = vmatprep.subr.mxu0 0.0
        %536 = vmatpush2.msra.mxu0 0.0
        %537 = vmatprep.subr.mxu0 0.0
        %538 = vmatpush2.msra.mxu0 0.0
        %539 = vmatprep.subr.mxu0 0.0
        %540 = vmatpush2.msra.mxu0 0.0
        %541 = vmatprep.subr.mxu0 0.0
        %542 = vmatpush2.msra.mxu0 0.0
        %543 = vmatprep.subr.mxu0 0.0
        %544 = vmatpush2.msra.mxu0 0.0
        %545 = vmatprep.subr.mxu0 0.0
        %546 = vmatpush2.msra.mxu0 0.0
        %547 = vmatprep.mubr.f32.mxu0 0.0
        %548 = vmatmul.mubr.f32.gmra.mxu0 %v465
        %v549 = vpop.f32.mrf.mxu0
        %v550 = vadd.f32 0.0, %v549
        %v551 = vpop.f32.mrf.mxu0
        %552 = vdwg.mxu0
        %v553 = vadd.f32 %v427, %v550
        %v554 = vtanh.pop %v553
        %v555 = vadd.f32 %v466, %v554
        %556 = vmatprep.subr.mxu0 0.0
        %557 = vmatpush1.msra.mxu0 %v482
        %558 = vmatprep.subr.mxu0 0.0
        %559 = vmatpush1.msra.mxu0 %v481
        %560 = vmatprep.subr.mxu0 0.0
        %561 = vmatpush1.msra.mxu0 %v480
        %562 = vmatprep.subr.mxu0 0.0
        %563 = vmatpush1.msra.mxu0 %v479
        %564 = vmatprep.subr.mxu0 0.0
        %565 = vmatpush1.msra.mxu0 %v478
        %566 = vmatprep.subr.mxu0 0.0
        %567 = vmatpush1.msra.mxu0 %v477
        %568 = vmatprep.subr.mxu0 0.0
        %569 = vmatpush1.msra.mxu0 %v476
        %570 = vmatprep.subr.mxu0 0.0
        %571 = vmatpush1.msra.mxu0 %v475
        %572 = vmatprep.subr.mxu0 0.0
        %573 = vmatpush1.msra.mxu0 %v474
        %574 = vmatprep.subr.mxu0 0.0
        %575 = vmatpush1.msra.mxu0 %v473
        %576 = vmatprep.subr.mxu0 0.0
        %577 = vmatpush1.msra.mxu0 %v472
        %578 = vmatprep.subr.mxu0 0.0
        %579 = vmatpush1.msra.mxu0 %v471
        %580 = vmatprep.subr.mxu0 0.0
        %581 = vmatpush1.msra.mxu0 %v470
        %582 = vmatprep.subr.mxu0 0.0
        %583 = vmatpush1.msra.mxu0 %v469
        %584 = vmatprep.subr.mxu0 0.0
        %585 = vmatpush1.msra.mxu0 %v468
        %586 = vmatprep.subr.mxu0 0.0
        %587 = vmatpush1.msra.mxu0 %v467
        %588 = vmatprep.subr.mxu0 0.0
        %589 = vmatpush2.msra.mxu0 0.0
        %590 = vmatprep.subr.mxu0 0.0
        %591 = vmatpush2.msra.mxu0 0.0
        %592 = vmatprep.subr.mxu0 0.0
        %593 = vmatpush2.msra.mxu0 0.0
        %594 = vmatprep.subr.mxu0 0.0
        %595 = vmatpush2.msra.mxu0 0.0
        %596 = vmatprep.subr.mxu0 0.0
        %597 = vmatpush2.msra.mxu0 0.0
        %598 = vmatprep.subr.mxu0 0.0
        %599 = vmatpush2.msra.mxu0 0.0
        %600 = vmatprep.subr.mxu0 0.0
        %601 = vmatpush2.msra.mxu0 0.0
        %602 = vmatprep.subr.mxu0 0.0
        %603 = vmatpush2.msra.mxu0 0.0
        %604 = vmatprep.subr.mxu0 0.0
        %605 = vmatpush2.msra.mxu0 0.0
        %606 = vmatprep.subr.mxu0 0.0
        %607 = vmatpush2.msra.mxu0 0.0
        %608 = vmatprep.subr.mxu0 0.0
        %609 = vmatpush2.msra.mxu0 0.0
        %610 = vmatprep.subr.mxu0 0.0
        %611 = vmatpush2.msra.mxu0 0.0
        %612 = vmatprep.subr.mxu0 0.0
        %613 = vmatpush2.msra.mxu0 0.0
        %614 = vmatprep.subr.mxu0 0.0
        %615 = vmatpush2.msra.mxu0 0.0
        %616 = vmatprep.subr.mxu0 0.0
        %617 = vmatpush2.msra.mxu0 0.0
        %618 = vmatprep.subr.mxu0 0.0
        %619 = vmatpush2.msra.mxu0 0.0
        %620 = vmatprep.mubr.f32.mxu0 0.0
        %621 = vmatmul.mubr.f32.gmra.mxu0 %v554
        %v622 = vpop.f32.mrf.mxu0
        %v623 = vadd.f32 0.0, %v622
        %v624 = vpop.f32.mrf.mxu0
        %625 = vdwg.mxu0
        %v626 = vadd.f32 %v432, %v623
        %v627 = vtanh.pop %v626
        %v628 = vadd.f32 %v555, %v627
        %629 = vmatprep.subr.mxu0 0.0
        %630 = vmatpush1.msra.mxu0 %v482
        %631 = vmatprep.subr.mxu0 0.0
        %632 = vmatpush1.msra.mxu0 %v481
        %633 = vmatprep.subr.mxu0 0.0
        %634 = vmatpush1.msra.mxu0 %v480
        %635 = vmatprep.subr.mxu0 0.0
        %636 = vmatpush1.msra.mxu0 %v479
        %637 = vmatprep.subr.mxu0 0.0
        %638 = vmatpush1.msra.mxu0 %v478
        %639 = vmatprep.subr.mxu0 0.0
        %640 = vmatpush1.msra.mxu0 %v477
        %641 = vmatprep.subr.mxu0 0.0
        %642 = vmatpush1.msra.mxu0 %v476
        %643 = vmatprep.subr.mxu0 0.0
        %644 = vmatpush1.msra.mxu0 %v475
        %645 = vmatprep.subr.mxu0 0.0
        %646 = vmatpush1.msra.mxu0 %v474
        %647 = vmatprep.subr.mxu0 0.0
        %648 = vmatpush1.msra.mxu0 %v473
        %649 = vmatprep.subr.mxu0 0.0
        %650 = vmatpush1.msra.mxu0 %v472
        %651 = vmatprep.subr.mxu0 0.0
        %652 = vmatpush1.msra.mxu0 %v471
        %653 = vmatprep.subr.mxu0 0.0
        %654 = vmatpush1.msra.mxu0 %v470
        %655 = vmatprep.subr.mxu0 0.0
        %656 = vmatpush1.msra.mxu0 %v469
        %657 = vmatprep.subr.mxu0 0.0
        %658 = vmatpush1.msra.mxu0 %v468
        %659 = vmatprep.subr.mxu0 0.0
        %660 = vmatpush1.msra.mxu0 %v467
        %661 = vmatprep.subr.mxu0 0.0
        %662 = vmatpush2.msra.mxu0 0.0
        %663 = vmatprep.subr.mxu0 0.0
        %664 = vmatpush2.msra.mxu0 0.0
        %665 = vmatprep.subr.mxu0 0.0
        %666 = vmatpush2.msra.mxu0 0.0
        %667 = vmatprep.subr.mxu0 0.0
        %668 = vmatpush2.msra.mxu0 0.0
        %669 = vmatprep.subr.mxu0 0.0
        %670 = vmatpush2.msra.mxu0 0.0
        %671 = vmatprep.subr.mxu0 0.0
        %672 = vmatpush2.msra.mxu0 0.0
        %673 = vmatprep.subr.mxu0 0.0
        %674 = vmatpush2.msra.mxu0 0.0
        %675 = vmatprep.subr.mxu0 0.0
        %676 = vmatpush2.msra.mxu0 0.0
        %677 = vmatprep.subr.mxu0 0.0
        %678 = vmatpush2.msra.mxu0 0.0
        %679 = vmatprep.subr.mxu0 0.0
        %680 = vmatpush2.msra.mxu0 0.0
        %681 = vmatprep.subr.mxu0 0.0
        %682 = vmatpush2.msra.mxu0 0.0
        %683 = vmatprep.subr.mxu0 0.0
        %684 = vmatpush2.msra.mxu0 0.0
        %685 = vmatprep.subr.mxu0 0.0
        %686 = vmatpush2.msra.mxu0 0.0
        %687 = vmatprep.subr.mxu0 0.0
        %688 = vmatpush2.msra.mxu0 0.0
        %689 = vmatprep.subr.mxu0 0.0
        %690 = vmatpush2.msra.mxu0 0.0
        %691 = vmatprep.subr.mxu0 0.0
        %692 = vmatpush2.msra.mxu0 0.0
        %693 = vmatprep.mubr.f32.mxu0 0.0
        %694 = vmatmul.mubr.f32.gmra.mxu0 %v627
        %v695 = vpop.f32.mrf.mxu0
        %v696 = vadd.f32 0.0, %v695
        %v697 = vpop.f32.mrf.mxu0
        %698 = vdwg.mxu0
        %v699 = vadd.f32 %v437, %v696
        %v700 = vtanh.pop %v699
        %v701 = vadd.f32 %v628, %v700
        %702 = vmatprep.subr.mxu0 0.0
        %703 = vmatpush1.msra.mxu0 %v482
        %704 = vmatprep.subr.mxu0 0.0
        %705 = vmatpush1.msra.mxu0 %v481
        %706 = vmatprep.subr.mxu0 0.0
        %707 = vmatpush1.msra.mxu0 %v480
        %708 = vmatprep.subr.mxu0 0.0
        %709 = vmatpush1.msra.mxu0 %v479
        %710 = vmatprep.subr.mxu0 0.0
        %711 = vmatpush1.msra.mxu0 %v478
        %712 = vmatprep.subr.mxu0 0.0
        %713 = vmatpush1.msra.mxu0 %v477
        %714 = vmatprep.subr.mxu0 0.0
        %715 = vmatpush1.msra.mxu0 %v476
        %716 = vmatprep.subr.mxu0 0.0
        %717 = vmatpush1.msra.mxu0 %v475
        %718 = vmatprep.subr.mxu0 0.0
        %719 = vmatpush1.msra.mxu0 %v474
        %720 = vmatprep.subr.mxu0 0.0
        %721 = vmatpush1.msra.mxu0 %v473
        %722 = vmatprep.subr.mxu0 0.0
        %723 = vmatpush1.msra.mxu0 %v472
        %724 = vmatprep.subr.mxu0 0.0
        %725 = vmatpush1.msra.mxu0 %v471
        %726 = vmatprep.subr.mxu0 0.0
        %727 = vmatpush1.msra.mxu0 %v470
        %728 = vmatprep.subr.mxu0 0.0
        %729 = vmatpush1.msra.mxu0 %v469
        %730 = vmatprep.subr.mxu0 0.0
        %731 = vmatpush1.msra.mxu0 %v468
        %732 = vmatprep.subr.mxu0 0.0
        %733 = vmatpush1.msra.mxu0 %v467
        %734 = vmatprep.subr.mxu0 0.0
        %735 = vmatpush2.msra.mxu0 0.0
        %736 = vmatprep.subr.mxu0 0.0
        %737 = vmatpush2.msra.mxu0 0.0
        %738 = vmatprep.subr.mxu0 0.0
        %739 = vmatpush2.msra.mxu0 0.0
        %740 = vmatprep.subr.mxu0 0.0
        %741 = vmatpush2.msra.mxu0 0.0
        %742 = vmatprep.subr.mxu0 0.0
        %743 = vmatpush2.msra.mxu0 0.0
        %744 = vmatprep.subr.mxu0 0.0
        %745 = vmatpush2.msra.mxu0 0.0
        %746 = vmatprep.subr.mxu0 0.0
        %747 = vmatpush2.msra.mxu0 0.0
        %748 = vmatprep.subr.mxu0 0.0
        %749 = vmatpush2.msra.mxu0 0.0
        %750 = vmatprep.subr.mxu0 0.0
        %751 = vmatpush2.msra.mxu0 0.0
        %752 = vmatprep.subr.mxu0 0.0
        %753 = vmatpush2.msra.mxu0 0.0
        %754 = vmatprep.subr.mxu0 0.0
        %755 = vmatpush2.msra.mxu0 0.0
        %756 = vmatprep.subr.mxu0 0.0
        %757 = vmatpush2.msra.mxu0 0.0
        %758 = vmatprep.subr.mxu0 0.0
        %759 = vmatpush2.msra.mxu0 0.0
        %760 = vmatprep.subr.mxu0 0.0
        %761 = vmatpush2.msra.mxu0 0.0
        %762 = vmatprep.subr.mxu0 0.0
        %763 = vmatpush2.msra.mxu0 0.0
        %764 = vmatprep.subr.mxu0 0.0
        %765 = vmatpush2.msra.mxu0 0.0
        %766 = vmatprep.mubr.f32.mxu0 0.0
        %767 = vmatmul.mubr.f32.gmra.mxu0 %v700
        %v768 = vpop.f32.mrf.mxu0
        %v769 = vadd.f32 0.0, %v768
        %v770 = vpop.f32.mrf.mxu0
        %771 = vdwg.mxu0
        %v772 = vadd.f32 %v442, %v769
        %v773 = vtanh.pop %v772
        %v774 = vadd.f32 %v701, %v773
        %775 = vmatprep.subr.mxu0 0.0
        %776 = vmatpush1.msra.mxu0 %v482
        %777 = vmatprep.subr.mxu0 0.0
        %778 = vmatpush1.msra.mxu0 %v481
        %779 = vmatprep.subr.mxu0 0.0
        %780 = vmatpush1.msra.mxu0 %v480
        %781 = vmatprep.subr.mxu0 0.0
        %782 = vmatpush1.msra.mxu0 %v479
        %783 = vmatprep.subr.mxu0 0.0
        %784 = vmatpush1.msra.mxu0 %v478
        %785 = vmatprep.subr.mxu0 0.0
        %786 = vmatpush1.msra.mxu0 %v477
        %787 = vmatprep.subr.mxu0 0.0
        %788 = vmatpush1.msra.mxu0 %v476
        %789 = vmatprep.subr.mxu0 0.0
        %790 = vmatpush1.msra.mxu0 %v475
        %791 = vmatprep.subr.mxu0 0.0
        %792 = vmatpush1.msra.mxu0 %v474
        %793 = vmatprep.subr.mxu0 0.0
        %794 = vmatpush1.msra.mxu0 %v473
        %795 = vmatprep.subr.mxu0 0.0
        %796 = vmatpush1.msra.mxu0 %v472
        %797 = vmatprep.subr.mxu0 0.0
        %798 = vmatpush1.msra.mxu0 %v471
        %799 = vmatprep.subr.mxu0 0.0
        %800 = vmatpush1.msra.mxu0 %v470
        %801 = vmatprep.subr.mxu0 0.0
        %802 = vmatpush1.msra.mxu0 %v469
        %803 = vmatprep.subr.mxu0 0.0
        %804 = vmatpush1.msra.mxu0 %v468
        %805 = vmatprep.subr.mxu0 0.0
        %806 = vmatpush1.msra.mxu0 %v467
        %807 = vmatprep.subr.mxu0 0.0
        %808 = vmatpush2.msra.mxu0 0.0
        %809 = vmatprep.subr.mxu0 0.0
        %810 = vmatpush2.msra.mxu0 0.0
        %811 = vmatprep.subr.mxu0 0.0
        %812 = vmatpush2.msra.mxu0 0.0
        %813 = vmatprep.subr.mxu0 0.0
        %814 = vmatpush2.msra.mxu0 0.0
        %815 = vmatprep.subr.mxu0 0.0
        %816 = vmatpush2.msra.mxu0 0.0
        %817 = vmatprep.subr.mxu0 0.0
        %818 = vmatpush2.msra.mxu0 0.0
        %819 = vmatprep.subr.mxu0 0.0
        %820 = vmatpush2.msra.mxu0 0.0
        %821 = vmatprep.subr.mxu0 0.0
        %822 = vmatpush2.msra.mxu0 0.0
        %823 = vmatprep.subr.mxu0 0.0
        %824 = vmatpush2.msra.mxu0 0.0
        %825 = vmatprep.subr.mxu0 0.0
        %826 = vmatpush2.msra.mxu0 0.0
        %827 = vmatprep.subr.mxu0 0.0
        %828 = vmatpush2.msra.mxu0 0.0
        %829 = vmatprep.subr.mxu0 0.0
        %830 = vmatpush2.msra.mxu0 0.0
        %831 = vmatprep.subr.mxu0 0.0
        %832 = vmatpush2.msra.mxu0 0.0
        %833 = vmatprep.subr.mxu0 0.0
        %834 = vmatpush2.msra.mxu0 0.0
        %835 = vmatprep.subr.mxu0 0.0
        %836 = vmatpush2.msra.mxu0 0.0
        %837 = vmatprep.subr.mxu0 0.0
        %838 = vmatpush2.msra.mxu0 0.0
        %839 = vmatprep.mubr.f32.mxu0 0.0
        %840 = vmatmul.mubr.f32.gmra.mxu0 %v773
        %v841 = vpop.f32.mrf.mxu0
        %v842 = vadd.f32 0.0, %v841
        %v843 = vpop.f32.mrf.mxu0
        %844 = vdwg.mxu0
        %v845 = vadd.f32 %v447, %v842
        %v846 = vtanh.pop %v845
        %v847 = vadd.f32 %v774, %v846
        %848 = vmatprep.subr.mxu0 0.0
        %849 = vmatpush1.msra.mxu0 %v482
        %850 = vmatprep.subr.mxu0 0.0
        %851 = vmatpush1.msra.mxu0 %v481
        %852 = vmatprep.subr.mxu0 0.0
        %853 = vmatpush1.msra.mxu0 %v480
        %854 = vmatprep.subr.mxu0 0.0
        %855 = vmatpush1.msra.mxu0 %v479
        %856 = vmatprep.subr.mxu0 0.0
        %857 = vmatpush1.msra.mxu0 %v478
        %858 = vmatprep.subr.mxu0 0.0
        %859 = vmatpush1.msra.mxu0 %v477
        %860 = vmatprep.subr.mxu0 0.0
        %861 = vmatpush1.msra.mxu0 %v476
        %862 = vmatprep.subr.mxu0 0.0
        %863 = vmatpush1.msra.mxu0 %v475
        %864 = vmatprep.subr.mxu0 0.0
        %865 = vmatpush1.msra.mxu0 %v474
        %866 = vmatprep.subr.mxu0 0.0
        %867 = vmatpush1.msra.mxu0 %v473
        %868 = vmatprep.subr.mxu0 0.0
        %869 = vmatpush1.msra.mxu0 %v472
        %870 = vmatprep.subr.mxu0 0.0
        %871 = vmatpush1.msra.mxu0 %v471
        %872 = vmatprep.subr.mxu0 0.0
        %873 = vmatpush1.msra.mxu0 %v470
        %874 = vmatprep.subr.mxu0 0.0
        %875 = vmatpush1.msra.mxu0 %v469
        %876 = vmatprep.subr.mxu0 0.0
        %877 = vmatpush1.msra.mxu0 %v468
        %878 = vmatprep.subr.mxu0 0.0
        %879 = vmatpush1.msra.mxu0 %v467
        %880 = vmatprep.subr.mxu0 0.0
        %881 = vmatpush2.msra.mxu0 0.0
        %882 = vmatprep.subr.mxu0 0.0
        %883 = vmatpush2.msra.mxu0 0.0
        %884 = vmatprep.subr.mxu0 0.0
        %885 = vmatpush2.msra.mxu0 0.0
        %886 = vmatprep.subr.mxu0 0.0
        %887 = vmatpush2.msra.mxu0 0.0
        %888 = vmatprep.subr.mxu0 0.0
        %889 = vmatpush2.msra.mxu0 0.0
        %890 = vmatprep.subr.mxu0 0.0
        %891 = vmatpush2.msra.mxu0 0.0
        %892 = vmatprep.subr.mxu0 0.0
        %893 = vmatpush2.msra.mxu0 0.0
        %894 = vmatprep.subr.mxu0 0.0
        %895 = vmatpush2.msra.mxu0 0.0
        %896 = vmatprep.subr.mxu0 0.0
        %897 = vmatpush2.msra.mxu0 0.0
        %898 = vmatprep.subr.mxu0 0.0
        %899 = vmatpush2.msra.mxu0 0.0
        %900 = vmatprep.subr.mxu0 0.0
        %901 = vmatpush2.msra.mxu0 0.0
        %902 = vmatprep.subr.mxu0 0.0
        %903 = vmatpush2.msra.mxu0 0.0
        %904 = vmatprep.subr.mxu0 0.0
        %905 = vmatpush2.msra.mxu0 0.0
        %906 = vmatprep.subr.mxu0 0.0
        %907 = vmatpush2.msra.mxu0 0.0
        %908 = vmatprep.subr.mxu0 0.0
        %909 = vmatpush2.msra.mxu0 0.0
        %910 = vmatprep.subr.mxu0 0.0
        %911 = vmatpush2.msra.mxu0 0.0
        %912 = vmatprep.mubr.f32.mxu0 0.0
        %913 = vmatmul.mubr.f32.gmra.mxu0 %v846
        %v914 = vpop.f32.mrf.mxu0
        %v915 = vadd.f32 0.0, %v914
        %v916 = vpop.f32.mrf.mxu0
        %917 = vdwg.mxu0
        %v918 = vadd.f32 %v452, %v915
        %v919 = vtanh.pop %v918
        %v920 = vadd.f32 %v847, %v919
        %921 = vmatprep.subr.mxu0 0.0
        %922 = vmatpush1.msra.mxu0 %v482
        %923 = vmatprep.subr.mxu0 0.0
        %924 = vmatpush1.msra.mxu0 %v481
        %925 = vmatprep.subr.mxu0 0.0
        %926 = vmatpush1.msra.mxu0 %v480
        %927 = vmatprep.subr.mxu0 0.0
        %928 = vmatpush1.msra.mxu0 %v479
        %929 = vmatprep.subr.mxu0 0.0
        %930 = vmatpush1.msra.mxu0 %v478
        %931 = vmatprep.subr.mxu0 0.0
        %932 = vmatpush1.msra.mxu0 %v477
        %933 = vmatprep.subr.mxu0 0.0
        %934 = vmatpush1.msra.mxu0 %v476
        %935 = vmatprep.subr.mxu0 0.0
        %936 = vmatpush1.msra.mxu0 %v475
        %937 = vmatprep.subr.mxu0 0.0
        %938 = vmatpush1.msra.mxu0 %v474
        %939 = vmatprep.subr.mxu0 0.0
        %940 = vmatpush1.msra.mxu0 %v473
        %941 = vmatprep.subr.mxu0 0.0
        %942 = vmatpush1.msra.mxu0 %v472
        %943 = vmatprep.subr.mxu0 0.0
        %944 = vmatpush1.msra.mxu0 %v471
        %945 = vmatprep.subr.mxu0 0.0
        %946 = vmatpush1.msra.mxu0 %v470
        %947 = vmatprep.subr.mxu0 0.0
        %948 = vmatpush1.msra.mxu0 %v469
        %949 = vmatprep.subr.mxu0 0.0
        %950 = vmatpush1.msra.mxu0 %v468
        %951 = vmatprep.subr.mxu0 0.0
        %952 = vmatpush1.msra.mxu0 %v467
        %953 = vmatprep.subr.mxu0 0.0
        %954 = vmatpush2.msra.mxu0 0.0
        %955 = vmatprep.subr.mxu0 0.0
        %956 = vmatpush2.msra.mxu0 0.0
        %957 = vmatprep.subr.mxu0 0.0
        %958 = vmatpush2.msra.mxu0 0.0
        %959 = vmatprep.subr.mxu0 0.0
        %960 = vmatpush2.msra.mxu0 0.0
        %961 = vmatprep.subr.mxu0 0.0
        %962 = vmatpush2.msra.mxu0 0.0
        %963 = vmatprep.subr.mxu0 0.0
        %964 = vmatpush2.msra.mxu0 0.0
        %965 = vmatprep.subr.mxu0 0.0
        %966 = vmatpush2.msra.mxu0 0.0
        %967 = vmatprep.subr.mxu0 0.0
        %968 = vmatpush2.msra.mxu0 0.0
        %969 = vmatprep.subr.mxu0 0.0
        %970 = vmatpush2.msra.mxu0 0.0
        %971 = vmatprep.subr.mxu0 0.0
        %972 = vmatpush2.msra.mxu0 0.0
        %973 = vmatprep.subr.mxu0 0.0
        %974 = vmatpush2.msra.mxu0 0.0
        %975 = vmatprep.subr.mxu0 0.0
        %976 = vmatpush2.msra.mxu0 0.0
        %977 = vmatprep.subr.mxu0 0.0
        %978 = vmatpush2.msra.mxu0 0.0
        %979 = vmatprep.subr.mxu0 0.0
        %980 = vmatpush2.msra.mxu0 0.0
        %981 = vmatprep.subr.mxu0 0.0
        %982 = vmatpush2.msra.mxu0 0.0
        %983 = vmatprep.subr.mxu0 0.0
        %984 = vmatpush2.msra.mxu0 0.0
        %985 = vmatprep.mubr.f32.mxu0 0.0
        %986 = vmatmul.mubr.f32.gmra.mxu0 %v919
        %v987 = vpop.f32.mrf.mxu0
        %v988 = vadd.f32 0.0, %v987
        %v989 = vpop.f32.mrf.mxu0
        %990 = vdwg.mxu0
        %v991 = vadd.f32 %v457, %v988
        %v992 = vtanh.pop %v991
        %v993 = vadd.f32 %v920, %v992
        %994 = vmatprep.subr.mxu0 0.0
        %995 = vmatpush1.msra.mxu0 %v482
        %996 = vmatprep.subr.mxu0 0.0
        %997 = vmatpush1.msra.mxu0 %v481
        %998 = vmatprep.subr.mxu0 0.0
        %999 = vmatpush1.msra.mxu0 %v480
        %1000 = vmatprep.subr.mxu0 0.0
        %1001 = vmatpush1.msra.mxu0 %v479
        %1002 = vmatprep.subr.mxu0 0.0
        %1003 = vmatpush1.msra.mxu0 %v478
        %1004 = vmatprep.subr.mxu0 0.0
        %1005 = vmatpush1.msra.mxu0 %v477
        %1006 = vmatprep.subr.mxu0 0.0
        %1007 = vmatpush1.msra.mxu0 %v476
        %1008 = vmatprep.subr.mxu0 0.0
        %1009 = vmatpush1.msra.mxu0 %v475
        %1010 = vmatprep.subr.mxu0 0.0
        %1011 = vmatpush1.msra.mxu0 %v474
        %1012 = vmatprep.subr.mxu0 0.0
        %1013 = vmatpush1.msra.mxu0 %v473
        %1014 = vmatprep.subr.mxu0 0.0
        %1015 = vmatpush1.msra.mxu0 %v472
        %1016 = vmatprep.subr.mxu0 0.0
        %1017 = vmatpush1.msra.mxu0 %v471
        %1018 = vmatprep.subr.mxu0 0.0
        %1019 = vmatpush1.msra.mxu0 %v470
        %1020 = vmatprep.subr.mxu0 0.0
        %1021 = vmatpush1.msra.mxu0 %v469
        %1022 = vmatprep.subr.mxu0 0.0
        %1023 = vmatpush1.msra.mxu0 %v468
        %1024 = vmatprep.subr.mxu0 0.0
        %1025 = vmatpush1.msra.mxu0 %v467
        %1026 = vmatprep.subr.mxu0 0.0
        %1027 = vmatpush2.msra.mxu0 0.0
        %1028 = vmatprep.subr.mxu0 0.0
        %1029 = vmatpush2.msra.mxu0 0.0
        %1030 = vmatprep.subr.mxu0 0.0
        %1031 = vmatpush2.msra.mxu0 0.0
        %1032 = vmatprep.subr.mxu0 0.0
        %1033 = vmatpush2.msra.mxu0 0.0
        %1034 = vmatprep.subr.mxu0 0.0
        %1035 = vmatpush2.msra.mxu0 0.0
        %1036 = vmatprep.subr.mxu0 0.0
        %1037 = vmatpush2.msra.mxu0 0.0
        %1038 = vmatprep.subr.mxu0 0.0
        %1039 = vmatpush2.msra.mxu0 0.0
        %1040 = vmatprep.subr.mxu0 0.0
        %1041 = vmatpush2.msra.mxu0 0.0
        %1042 = vmatprep.subr.mxu0 0.0
        %1043 = vmatpush2.msra.mxu0 0.0
        %1044 = vmatprep.subr.mxu0 0.0
        %1045 = vmatpush2.msra.mxu0 0.0
        %1046 = vmatprep.subr.mxu0 0.0
        %1047 = vmatpush2.msra.mxu0 0.0
        %1048 = vmatprep.subr.mxu0 0.0
        %1049 = vmatpush2.msra.mxu0 0.0
        %1050 = vmatprep.subr.mxu0 0.0
        %1051 = vmatpush2.msra.mxu0 0.0
        %1052 = vmatprep.subr.mxu0 0.0
        %1053 = vmatpush2.msra.mxu0 0.0
        %1054 = vmatprep.subr.mxu0 0.0
        %1055 = vmatpush2.msra.mxu0 0.0
        %1056 = vmatprep.subr.mxu0 0.0
        %1057 = vmatpush2.msra.mxu0 0.0
        %1058 = vmatprep.mubr.f32.mxu0 0.0
        %1059 = vmatmul.mubr.f32.gmra.mxu0 %v992
        %v1060 = vpop.f32.mrf.mxu0
        %v1061 = vadd.f32 0.0, %v1060
        %v1062 = vpop.f32.mrf.mxu0
        %1063 = vdwg.mxu0
        %v1064 = vadd.f32 %v462, %v1061
        %v1065 = vtanh.pop %v1064
        %v1066 = vadd.f32 %v993, %v1065
        %1067 = vst [vmem:[#allocation2] sm:$0xff] %v1065
        %1068 = vst [vmem:[#allocation3] sm:$0xff] %v1066
        %p1069 = scmp.eq.s32.totalorder %s28, 1
        // Predicated region
        $region65: #{tpu_custom_call.1} parent=43 // pred_check
          %p1070 = pneg %p1069
        $region66: #{tpu_custom_call.1} parent=43 // pred_check_branch
          %1072 = sbr.rel (%p1070) target = $region68
        $region67: #{tpu_custom_call.1} parent=43 // pred_region
          %v1073 = vld [vmem:[#allocation3] sm:$0xff]
          %v1074 = vmul.f32 %v1073, 0.0625
          %v1075 = vld [vmem:[#allocation10] sm:$0xff]
          %v1076 = vld [vmem:[#allocation10 + $0x8] sm:$0xff]
          %v1077 = vld [vmem:[#allocation10 + $0x10] sm:$0xff]
          %v1078 = vld [vmem:[#allocation10 + $0x18] sm:$0xff]
          %v1079 = vld [vmem:[#allocation10 + $0x20] sm:$0xff]
          %v1080 = vld [vmem:[#allocation10 + $0x28] sm:$0xff]
          %v1081 = vld [vmem:[#allocation10 + $0x30] sm:$0xff]
          %v1082 = vld [vmem:[#allocation10 + $0x38] sm:$0xff]
          %v1083 = vld [vmem:[#allocation10 + $0x40] sm:$0xff]
          %v1084 = vld [vmem:[#allocation10 + $0x48] sm:$0xff]
          %v1085 = vld [vmem:[#allocation10 + $0x50] sm:$0xff]
          %v1086 = vld [vmem:[#allocation10 + $0x58] sm:$0xff]
          %v1087 = vld [vmem:[#allocation10 + $0x60] sm:$0xff]
          %v1088 = vld [vmem:[#allocation10 + $0x68] sm:$0xff]
          %v1089 = vld [vmem:[#allocation10 + $0x70] sm:$0xff]
          %v1090 = vld [vmem:[#allocation10 + $0x78] sm:$0xff]
          %v1091 = vld [vmem:[%s5] sm:$0x1]
          %v1093 = vlaneseq
          %v1094 = vshrl.u32 %v1093, 7
          %v1095 = vsub.s32 0, %v1094
          %v1096 = vrot.slane %v1091, %v1095
          %1098 = vmatprep.subr.mxu0 0.0
          %1099 = vmatpush1.msra.mxu0 %v1090
          %1100 = vmatprep.subr.mxu0 0.0
          %1101 = vmatpush1.msra.mxu0 %v1089
          %1102 = vmatprep.subr.mxu0 0.0
          %1103 = vmatpush1.msra.mxu0 %v1088
          %1104 = vmatprep.subr.mxu0 0.0
          %1105 = vmatpush1.msra.mxu0 %v1087
          %1106 = vmatprep.subr.mxu0 0.0
          %1107 = vmatpush1.msra.mxu0 %v1086
          %1108 = vmatprep.subr.mxu0 0.0
          %1109 = vmatpush1.msra.mxu0 %v1085
          %1110 = vmatprep.subr.mxu0 0.0
          %1111 = vmatpush1.msra.mxu0 %v1084
          %1112 = vmatprep.subr.mxu0 0.0
          %1113 = vmatpush1.msra.mxu0 %v1083
          %1114 = vmatprep.subr.mxu0 0.0
          %1115 = vmatpush1.msra.mxu0 %v1082
          %1116 = vmatprep.subr.mxu0 0.0
          %1117 = vmatpush1.msra.mxu0 %v1081
          %1118 = vmatprep.subr.mxu0 0.0
          %1119 = vmatpush1.msra.mxu0 %v1080
          %1120 = vmatprep.subr.mxu0 0.0
          %1121 = vmatpush1.msra.mxu0 %v1079
          %1122 = vmatprep.subr.mxu0 0.0
          %1123 = vmatpush1.msra.mxu0 %v1078
          %1124 = vmatprep.subr.mxu0 0.0
          %1125 = vmatpush1.msra.mxu0 %v1077
          %1126 = vmatprep.subr.mxu0 0.0
          %1127 = vmatpush1.msra.mxu0 %v1076
          %1128 = vmatprep.subr.mxu0 0.0
          %1129 = vmatpush1.msra.mxu0 %v1075
          %1130 = vmatprep.subr.mxu0 0.0
          %1131 = vmatpush2.msra.mxu0 0.0
          %1132 = vmatprep.subr.mxu0 0.0
          %1133 = vmatpush2.msra.mxu0 0.0
          %1134 = vmatprep.subr.mxu0 0.0
          %1135 = vmatpush2.msra.mxu0 0.0
          %1136 = vmatprep.subr.mxu0 0.0
          %1137 = vmatpush2.msra.mxu0 0.0
          %1138 = vmatprep.subr.mxu0 0.0
          %1139 = vmatpush2.msra.mxu0 0.0
          %1140 = vmatprep.subr.mxu0 0.0
          %1141 = vmatpush2.msra.mxu0 0.0
          %1142 = vmatprep.subr.mxu0 0.0
          %1143 = vmatpush2.msra.mxu0 0.0
          %1144 = vmatprep.subr.mxu0 0.0
          %1145 = vmatpush2.msra.mxu0 0.0
          %1146 = vmatprep.subr.mxu0 0.0
          %1147 = vmatpush2.msra.mxu0 0.0
          %1148 = vmatprep.subr.mxu0 0.0
          %1149 = vmatpush2.msra.mxu0 0.0
          %1150 = vmatprep.subr.mxu0 0.0
          %1151 = vmatpush2.msra.mxu0 0.0
          %1152 = vmatprep.subr.mxu0 0.0
          %1153 = vmatpush2.msra.mxu0 0.0
          %1154 = vmatprep.subr.mxu0 0.0
          %1155 = vmatpush2.msra.mxu0 0.0
          %1156 = vmatprep.subr.mxu0 0.0
          %1157 = vmatpush2.msra.mxu0 0.0
          %1158 = vmatprep.subr.mxu0 0.0
          %1159 = vmatpush2.msra.mxu0 0.0
          %1160 = vmatprep.subr.mxu0 0.0
          %1161 = vmatpush2.msra.mxu0 0.0
          %1162 = vmatprep.mubr.f32.mxu0 0.0
          %1163 = vmatmul.mubr.f32.gmra.mxu0 %v1074
          %v1164 = vpop.f32.mrf.mxu0
          %v1165 = vadd.f32 %v1096, %v1164
          %v1166 = vpop.f32.mrf.mxu0
          %1167 = vdwg.mxu0
          %v1168 = vsub.f32 0.0, %v1165
          %v1169 = vmul.f32 %v1168, 1.442695
          %v1170 = vpow.pop %v1169
          %v1171 = vadd.f32 %v1170, 1.0
          %v1172 = vrcp.pop %v1171
          %v1173 = vmul.f32 1.0, %v1172
          %1174 = vst [vmem:[#allocation12] sm:$0xff] %v1173
        $region68: #{tpu_custom_call.1} parent=43 // pred_fallthru
          _
        // Predicated region
        $region69: #{tpu_custom_call.1} parent=43 // pred_check
          %p1175 = pneg %p186
        $region70: #{tpu_custom_call.1} parent=43 // pred_check_branch
          %1177 = sbr.rel (%p1175) target = $region72
        $region71: #{tpu_custom_call.1} parent=43 // pred_region
          %s1179 = ssub.s32 128, 128
          %1180 = vsyncadd [#allocation6], %s1179
          %s1181 = smul.addr %s27, 128
          %s1182 = scalar_lea.hbm %s6, %s1181
          %s1184 = sshll.u32 [#allocation12], 4
          %s1185 = int_to_ptr.vmem [resolvable:$true] %s1184
          %1187 = dma.vmem_to_hbm [thread:$0]  %s1185, 128, %s1182, [#allocation6]
        $region72: #{tpu_custom_call.1} parent=43 // pred_fallthru
          _
        // Predicated region
        $region73: #{tpu_custom_call.1} parent=43 // pred_check
          %p1188 = pneg %p186
        $region74: #{tpu_custom_call.1} parent=43 // pred_check_branch
          %1190 = sbr.rel (%p1188) target = $region76
        $region75: #{tpu_custom_call.1} parent=43 // pred_region
          %1191 = dma.done [#allocation6], 128
        $region76: #{tpu_custom_call.1} parent=43 // pred_fallthru
          _
      $region44: #{tpu_custom_call.1} parent=5 // pred_fallthru
        _
      %p1192 = scmp.le.s32.totalorder 2, %s18
      // Predicated region
      $region77: #{tpu_custom_call.1} parent=5 // pred_check
        %p1193 = pneg %p1192
      $region78: #{tpu_custom_call.1} parent=5 // pred_check_branch
        %1195 = sbr.rel (%p1193) target = $region80
      $region79: #{tpu_custom_call.1} parent=5 // pred_region
        %s1196 = ssub.s32 %s18, 2
      $region80: #{tpu_custom_call.1} parent=5 // pred_fallthru
        _
    $region6: #{tpu_custom_call.1} parent=1 // loop_footer
      %s22 = sadd.s32 1, %s18
    $region7: #{tpu_custom_call.1} parent=1 // loop_footer_branch
      %17 = sbr.rel target = $region3
    $region8: #{tpu_custom_call.1} parent=1 // loop_exit
      _
    %1197 = vsyncpa [#allocation5], 1
    %s1198 = scalar_lea.sflag [#allocation5], 1
    %1199 = vsyncpa %s1198, 1
    %1200 = vsyncpa [#allocation8], 1
    %1201 = vsyncpa [#allocation11], 1
    %1202 = vsyncpa [#allocation6], 1
    %s1203 = scalar_lea.sflag [#allocation6], 1
    %1204 = vsyncpa %s1203, 1

</llo_original>
